<compile_context>
chip_gen: v5e
topology: v5e:2x2
jax: 0.10.0
libtpu: 0.0.40
codegen_flags: <defaults>
</compile_context>

<pallas_src>
import functools
import math

import jax
import jax.numpy as jnp
import numpy as np
from jax.experimental import pallas as pl
from jax.experimental.pallas import tpu as pltpu

_LANE = 128
_NEG_INF = -1e30


def _round_up(x, m):
    return (x + m - 1) // m * m


def word_prob_kernel(h_ref, w1_ref, b1_ref, vg_ref, bg_ref, w2_ref, b2_ref,
                     xids_ref, att_ref, out_ref,
                     hid_ref, g_ref, wsrc_ref, m_ref, l_ref, slab_ref, *, subv):
    """Grid = (batch_tile i, pass p, vocab_tile j).

    p == 0: (at j == 0) first linear + tanh and copy gate; then per-j vocab
            logits tile -> slab scratch + online softmax max/sum.
    p == 1: per-j normalize + gate + scatter_add, one lane-dense store per tile.
    """
    p = pl.program_id(1)
    j = pl.program_id(2)
    vt = out_ref.shape[1]

    # ---- once per batch tile: hidden state, copy gate, per-source weights ---
    @pl.when(jnp.logical_and(p == 0, j == 0))
    def _init():
        pre = (jnp.dot(h_ref[...], w1_ref[...],
                       preferred_element_type=jnp.float32) + b1_ref[...])
        hid_ref[...] = jnp.tanh(pre).astype(hid_ref.dtype)
        # Copy-gate projection: tiny (Dp, 128) matmul; gate lives in column 0
        # (static slice, no masked iota reduce, no extra Hp lanes on w1/w2).
        zf = (jnp.dot(h_ref[...], vg_ref[...],
                      preferred_element_type=jnp.float32) + bg_ref[...])
        g = 1.0 / (1.0 + jnp.exp(-zf[:, 0:1]))                      # (TB, 1)
        g_ref[...] = g
        wsrc_ref[...] = (1.0 - g) * att_ref[...]                    # (TB, S)
        m_ref[...] = jnp.full(m_ref.shape, -jnp.inf, m_ref.dtype)
        l_ref[...] = jnp.zeros(l_ref.shape, l_ref.dtype)

    # ---- pass 0: logits tile -> slab, online softmax statistics -------------
    @pl.when(p == 0)
    def _logits():
        logit = (jnp.dot(hid_ref[...], w2_ref[...],
                         preferred_element_type=jnp.float32) + b2_ref[...])
        slab_ref[j] = logit                       # raw f32 logits, tile j
        m_old = m_ref[...]
        m_new = jnp.maximum(m_old, jnp.max(logit, axis=1, keepdims=True))
        l_ref[...] = (l_ref[...] * jnp.exp(m_old - m_new)
                      + jnp.sum(jnp.exp(logit - m_new), axis=1, keepdims=True))
        m_ref[...] = m_new

    # ---- pass 1: normalize + gate + scatter_add, chunked over lanes ---------
    @pl.when(p == 1)
    def _emit():
        lg = slab_ref[j]                                            # (TB, VT)
        m = m_ref[...]
        l = l_ref[...]
        linv = pl.reciprocal(l, approx=True)
        linv = linv * (2.0 - l * linv)   # one Newton step -> ~exact normalization
        g = g_ref[...]
        xids = xids_ref[...]                                        # (TB, S) i32
        wsrc = wsrc_ref[...]                                        # (TB, S) f32
        base = j * vt
        s_len = xids.shape[1]
        # Loop-interchange: vocab sub-chunks sized to stay register-resident,
        # inner loop over source steps, one lane-dense store per chunk.
        for c in range(vt // subv):
            lo = c * subv
            prob = jnp.exp(lg[:, lo:lo + subv] - m) * linv
            y = g * prob                      # padded/ext cols are exact zeros
            col = jax.lax.broadcasted_iota(jnp.int32, y.shape, 1) + (base + lo)
            # TODO(synk): for long sources (S >~ 64) move s onto a fori_loop /
            # grid axis instead of a full static unroll.
            for s in range(s_len):
                y = y + jnp.where(col == xids[:, s:s + 1], wsrc[:, s:s + 1], 0.0)
            out_ref[:, lo:lo + subv] = y.astype(out_ref.dtype)


def prepare_params(params, max_ext_len, matmul_dtype=jnp.bfloat16,
                   vt_target=1024):
    """One-time packing of module parameters for the kernel (NOT per step)."""
    H, D = params["w_ds"].shape
    V = params["w_logit"].shape[0]
    Dp = _round_up(D, _LANE)
    Hp = _round_up(H, _LANE)                       # gate NOT folded into w1
    Vext = V + int(max_ext_len)
    VT = min(vt_target, _round_up(Vext, _LANE))    # vocab tile width
    Vpe = _round_up(Vext, VT)                      # padded vocab (VT | Vpe)

    w1 = jnp.zeros((Dp, Hp), jnp.float32).at[:D, :H].set(params["w_ds"].T)
    b1 = jnp.zeros((1, Hp), jnp.float32).at[0, :H].set(params["b_ds"])
    vg = jnp.zeros((Dp, _LANE), jnp.float32).at[:D, 0].set(params["v"][0])
    bg = jnp.zeros((1, _LANE), jnp.float32).at[0, 0].set(params["bv"][0])
    w2 = jnp.zeros((Hp, Vpe), jnp.float32).at[:H, :V].set(params["w_logit"].T)
    # extension / lane-pad columns carry a -1e30 bias -> softmax exact zeros.
    # Keep b2 in f32 (never fold into the bf16 weights).
    b2 = jnp.full((1, Vpe), _NEG_INF, jnp.float32).at[0, :V].set(params["b_logit"])

    return {
        "w1": w1.astype(matmul_dtype), "b1": b1,
        "vg": vg.astype(matmul_dtype), "bg": bg,
        "w2": w2.astype(matmul_dtype), "b2": b2,
        "dims": dict(H=H, D=D, Dp=Dp, Hp=Hp, V=V, Vext=Vext, Vpe=Vpe, VT=VT),
    }


def _vmem_estimate(TB, Dp, Hp, VT, S, nv, wbytes):
    dbl = 2  # pipeline double-buffering of windowed blocks
    blocks = (TB * Dp * wbytes          # h
              + Dp * Hp * wbytes        # w1
              + Hp * 4                  # b1
              + Dp * _LANE * wbytes     # vg
              + _LANE * 4               # bg
              + Hp * VT * wbytes        # w2 vocab tile
              + VT * 4                  # b2 vocab tile
              + 2 * TB * S * 4          # xids + att_dist
              + TB * VT * 4)            # out tile
    scratch = (TB * Hp * wbytes + 3 * TB * 4 + TB * S * 4
               + nv * TB * VT * 4)      # f32 logit slab
    return dbl * blocks + scratch


def word_prob_forward(ds, ac, y_emb, att_dist, xids, kparams,
                      out_dtype=jnp.float32):
    """Returns the padded (Bp, Vpe) probability matrix.

    Rows >= B are batch padding (junk); columns >= Vext are exact zeros.  The
    padded result is returned as-is so the consumer can fuse/skip the slice
    (a wrapper-side out[:B, :Vext] costs a full extra HBM read+write).
    """
    d = kparams["dims"]
    D, Dp, Hp, Vpe, VT = d["D"], d["Dp"], d["Hp"], d["Vpe"], d["VT"]

    h = jnp.concatenate([ds, ac, y_emb], axis=1).astype(jnp.float32)
    B, S = att_dist.shape
    h = jnp.pad(h, ((0, 0), (0, Dp - D))).astype(kparams["w1"].dtype)

    # Batch tile: multiple of 16 (bf16 sublane packing), up to 256 to fill the
    # 256-wide MXU on v6e/v7x, capped so the f32 logit slab stays <= ~16 MiB.
    slab_budget = 16 << 20
    tb_cap = max(16, min(256, (slab_budget // (Vpe * 4)) // 16 * 16))
    TB = min(_round_up(B, 16), tb_cap)
    Bp = _round_up(B, TB)
    if Bp != B:
        h = jnp.pad(h, ((0, Bp - B), (0, 0)))
        att_dist = jnp.pad(att_dist, ((0, Bp - B), (0, 0)))
        xids = jnp.pad(xids, ((0, Bp - B), (0, 0)))

    xids = xids.astype(jnp.int32)
    att = att_dist.astype(jnp.float32)
    w1, b1, vg, bg, w2, b2 = (kparams[k]
                              for k in ("w1", "b1", "vg", "bg", "w2", "b2"))

    nb, nv = Bp // TB, Vpe // VT
    # Register-resident scatter sub-chunk (~64-128 KiB of f32 accumulator).
    subv = math.gcd(VT, 256 if TB <= 128 else 128)
    wbytes = w1.dtype.itemsize

    flops = (2 * Bp * Dp * Hp + 2 * Bp * Dp * _LANE + 2 * Bp * Hp * Vpe
             + 8 * Bp * Vpe + 3 * Bp * S * Vpe)
    transcendentals = Bp * (Hp + 2 * Vpe + 2)
    bytes_accessed = sum(int(np.prod(a.shape)) * a.dtype.itemsize
                         for a in (h, w1, b1, vg, bg, w2, b2, xids, att))
    bytes_accessed += Bp * Vpe * jnp.dtype(out_dtype).itemsize
    cost = pl.CostEstimate(flops=int(flops), transcendentals=int(transcendentals),
                           bytes_accessed=int(bytes_accessed))

    # Explicit scoped-VMEM request (defaults ~16 MiB v5e / 32 MiB v6e+), capped
    # at 64 MiB so we never exceed v7x's physical per-core VMEM.
    vmem_est = _vmem_estimate(TB, Dp, Hp, VT, S, nv, wbytes)
    vmem_limit = int(min(max(int(vmem_est * 1.5) + (4 << 20), 32 << 20), 64 << 20))

    fn = pl.pallas_call(
        functools.partial(word_prob_kernel, subv=subv),
        out_shape=jax.ShapeDtypeStruct((Bp, Vpe), out_dtype),
        grid=(nb, 2, nv),
        in_specs=[
            pl.BlockSpec((TB, Dp), lambda i, p, j: (i, 0)),       # h
            pl.BlockSpec((Dp, Hp), lambda i, p, j: (0, 0)),       # w1 (constant)
            pl.BlockSpec((1, Hp), lambda i, p, j: (0, 0)),        # b1
            pl.BlockSpec((Dp, _LANE), lambda i, p, j: (0, 0)),    # vg (copy gate)
            pl.BlockSpec((1, _LANE), lambda i, p, j: (0, 0)),     # bg
            # w2/b2 vocab tiles: streamed during pass 0, parked on tile 0 during
            # pass 1 so they are not re-DMA'd.
            pl.BlockSpec((Hp, VT), lambda i, p, j: (0, j * (1 - p))),
            pl.BlockSpec((1, VT), lambda i, p, j: (0, j * (1 - p))),
            pl.BlockSpec((TB, S), lambda i, p, j: (i, 0)),        # xids
            pl.BlockSpec((TB, S), lambda i, p, j: (i, 0)),        # att_dist
        ],
        # pass 0 keeps block (i, 0) resident (not written); pass 1 writes each
        # (i, j) output tile exactly once with a lane-dense full-width store.
        out_specs=pl.BlockSpec((TB, VT), lambda i, p, j: (i, j * p)),
        scratch_shapes=[
            pltpu.VMEM((TB, Hp), w2.dtype),         # hid = tanh(first linear)
            pltpu.VMEM((TB, 1), jnp.float32),       # g (copy gate)
            pltpu.VMEM((TB, S), jnp.float32),       # (1 - g) * att_dist
            pltpu.VMEM((TB, 1), jnp.float32),       # running softmax max
            pltpu.VMEM((TB, 1), jnp.float32),       # running softmax sum
            pltpu.VMEM((nv, TB, VT), jnp.float32),  # f32 logit slab
        ],
        compiler_params=pltpu.CompilerParams(
            dimension_semantics=("parallel", "arbitrary", "arbitrary"),
            vmem_limit_bytes=vmem_limit),
        cost_estimate=cost,
    )
    return fn(h, w1, b1, vg, bg, w2, b2, xids, att)


def reference_forward(ds, ac, y_emb, att_dist, xids, params, max_ext_len):
    """Pure-JAX f32 reference mirroring the PyTorch forward (copy=True)."""
    h = jnp.concatenate([ds, ac, y_emb], axis=1)
    logit = jnp.tanh(h @ params["w_ds"].T + params["b_ds"])
    logit = logit @ params["w_logit"].T + params["b_logit"]
    y_dec = jax.nn.softmax(logit, axis=1)
    if max_ext_len > 0:
        y_dec = jnp.concatenate(
            [y_dec, jnp.zeros((y_dec.shape[0], max_ext_len), y_dec.dtype)], axis=1)
    g = jax.nn.sigmoid(h @ params["v"].T + params["bv"])
    y_dec = g * y_dec
    upd = (1.0 - g) * att_dist
    rows = jnp.arange(y_dec.shape[0])[:, None]
    return y_dec.at[rows, xids].add(upd)


def xavier_uniform(key, shape):
    fan_out, fan_in = shape
    bound = float(np.sqrt(6.0 / (fan_in + fan_out)))
    return jax.random.uniform(key, shape, jnp.float32, -bound, bound)


if __name__ == "__main__":
    # Small shapes consistent with the module.
    B = 8           # batch
    H = 32          # hidden_size
    C = 32          # ctx_size
    Y = 16          # dim_y
    V = 128         # dict_size
    S = 8           # source length (xids / att_dist)
    MAX_EXT = 16    # max_ext_len
    D = H + C + Y

    key = jax.random.PRNGKey(0)
    keys = jax.random.split(key, 10)

    params = {
        "w_ds": xavier_uniform(keys[0], (H, D)),
        "b_ds": jnp.zeros((H,), jnp.float32),
        "w_logit": xavier_uniform(keys[1], (V, H)),
        "b_logit": jnp.zeros((V,), jnp.float32),
        "v": xavier_uniform(keys[2], (1, D)),
        "bv": jnp.zeros((1,), jnp.float32),
    }

    ds = jax.random.normal(keys[3], (B, H), jnp.float32)
    ac = jax.random.normal(keys[4], (B, C), jnp.float32)
    y_emb = jax.random.normal(keys[5], (B, Y), jnp.float32)
    att_logits = jax.random.normal(keys[6], (B, S), jnp.float32)
    att_dist = jax.nn.softmax(att_logits, axis=1)
    xids = jax.random.randint(keys[7], (B, S), 0, V + MAX_EXT, jnp.int32)

    # One-time parameter packing (bf16 weight streaming into the MXU).
    kparams = prepare_params(params, MAX_EXT, matmul_dtype=jnp.bfloat16)

    out = word_prob_forward(ds, ac, y_emb, att_dist, xids, kparams)
    out = jax.block_until_ready(out)

    ref = reference_forward(ds, ac, y_emb, att_dist, xids, params, MAX_EXT)
    ref = jax.block_until_ready(ref)

    # Trim padding on the host (pad columns are exact zeros, pad rows junk).
    d = kparams["dims"]
    out_np = np.asarray(out)[:B, :d["Vext"]]

    # bf16 matmul inputs => loosened (but tight for these magnitudes)
    # tolerance vs. the f32 reference; normalization itself is near-exact.
    np.testing.assert_allclose(out_np, np.asarray(ref), rtol=2e-2, atol=2e-3)
    print("KERNEL_OK")
</pallas_src>

<mosaic_0001>
module attributes {stable_mosaic.version = 11 : i64} {
  func.func @word_prob_kernel(%arg0: i32, %arg1: i32, %arg2: i32, %arg3: memref<16x128xbf16, #tpu.memory_space<vmem>>, %arg4: memref<128x128xbf16, #tpu.memory_space<vmem>>, %arg5: memref<1x128xf32, #tpu.memory_space<vmem>>, %arg6: memref<128x128xbf16, #tpu.memory_space<vmem>>, %arg7: memref<1x128xf32, #tpu.memory_space<vmem>>, %arg8: memref<128x256xbf16, #tpu.memory_space<vmem>>, %arg9: memref<1x256xf32, #tpu.memory_space<vmem>>, %arg10: memref<16x8xi32, #tpu.memory_space<vmem>>, %arg11: memref<16x8xf32, #tpu.memory_space<vmem>>, %arg12: memref<16x256xf32, #tpu.memory_space<vmem>>, %arg13: memref<16x128xbf16, #tpu.memory_space<vmem>>, %arg14: memref<16x1xf32, #tpu.memory_space<vmem>>, %arg15: memref<16x8xf32, #tpu.memory_space<vmem>>, %arg16: memref<16x1xf32, #tpu.memory_space<vmem>>, %arg17: memref<16x1xf32, #tpu.memory_space<vmem>>, %arg18: memref<1x16x256xf32, #tpu.memory_space<vmem>>) attributes {dimension_semantics = [#tpu.dimension_semantics<parallel>, #tpu.dimension_semantics<arbitrary>, #tpu.dimension_semantics<arbitrary>], iteration_bounds = array<i64: 1, 2, 1>, scalar_prefetch = 0 : i64, scratch_operands = 6 : i64, tpu.core_type = #tpu.core_type<tc>, window_params = [{transform_indices = @transform_0, window_bounds = array<i64: 16, 128>}, {pipeline_mode = #tpu.pipeline_mode<synchronous>, transform_indices = @transform_1, window_bounds = array<i64: 128, 128>}, {pipeline_mode = #tpu.pipeline_mode<synchronous>, transform_indices = @transform_2, window_bounds = array<i64: 1, 128>}, {pipeline_mode = #tpu.pipeline_mode<synchronous>, transform_indices = @transform_3, window_bounds = array<i64: 128, 128>}, {pipeline_mode = #tpu.pipeline_mode<synchronous>, transform_indices = @transform_4, window_bounds = array<i64: 1, 128>}, {transform_indices = @transform_5, window_bounds = array<i64: 128, 256>}, {transform_indices = @transform_6, window_bounds = array<i64: 1, 256>}, {transform_indices = @transform_7, window_bounds = array<i64: 16, 8>}, {transform_indices = @transform_8, window_bounds = array<i64: 16, 8>}, {transform_indices = @transform_9, window_bounds = array<i64: 16, 256>}]} {
    %c0_i32 = arith.constant 0 : i32
    %0 = arith.cmpi eq, %arg1, %c0_i32 : i32
    %c0_i32_0 = arith.constant 0 : i32
    %1 = arith.cmpi eq, %arg2, %c0_i32_0 : i32
    %2 = arith.andi %0, %1 : i1
    %3 = arith.extui %2 : i1 to i32
    %c0_i32_1 = arith.constant 0 : i32
    %4 = arith.cmpi ne, %3, %c0_i32_1 : i32
    scf.if %4 {
      %c0 = arith.constant 0 : index
      %c0_5 = arith.constant 0 : index
      %11 = vector.load %arg3[%c0, %c0_5] : memref<16x128xbf16, #tpu.memory_space<vmem>>, vector<16x128xbf16>
      %c0_6 = arith.constant 0 : index
      %c0_7 = arith.constant 0 : index
      %12 = vector.load %arg4[%c0_6, %c0_7] : memref<128x128xbf16, #tpu.memory_space<vmem>>, vector<128x128xbf16>
      %cst = arith.constant dense<0.000000e+00> : vector<16x128xf32>
      %13 = tpu.matmul %11, %12, %cst {dimension_numbers = #tpu.dot_dimension_numbers<[1], [0], [0], [1], [0, 0, 1, 1], [], []>} : vector<16x128xbf16>, vector<128x128xbf16>, vector<16x128xf32> -> vector<16x128xf32>
      %c0_8 = arith.constant 0 : index
      %c0_9 = arith.constant 0 : index
      %14 = vector.load %arg5[%c0_8, %c0_9] : memref<1x128xf32, #tpu.memory_space<vmem>>, vector<1x128xf32>
      %15 = vector.broadcast %14 : vector<1x128xf32> to vector<16x128xf32>
      %16 = arith.addf %13, %15 : vector<16x128xf32>
      %17 = math.tanh %16 : vector<16x128xf32>
      %18 = arith.truncf %17 : vector<16x128xf32> to vector<16x128xbf16>
      %c0_10 = arith.constant 0 : index
      %c0_11 = arith.constant 0 : index
      %19 = vector.load %arg13[%c0_10, %c0_11] : memref<16x128xbf16, #tpu.memory_space<vmem>>, vector<16x128xbf16>
      tpu.vector_store %arg13[%c0_10, %c0_11], %18 {strides = array<i32>} : memref<16x128xbf16, #tpu.memory_space<vmem>>, vector<16x128xbf16>,
      %c0_12 = arith.constant 0 : index
      %c0_13 = arith.constant 0 : index
      %20 = vector.load %arg3[%c0_12, %c0_13] : memref<16x128xbf16, #tpu.memory_space<vmem>>, vector<16x128xbf16>
      %c0_14 = arith.constant 0 : index
      %c0_15 = arith.constant 0 : index
      %21 = vector.load %arg6[%c0_14, %c0_15] : memref<128x128xbf16, #tpu.memory_space<vmem>>, vector<128x128xbf16>
      %cst_16 = arith.constant dense<0.000000e+00> : vector<16x128xf32>
      %22 = tpu.matmul %20, %21, %cst_16 {dimension_numbers = #tpu.dot_dimension_numbers<[1], [0], [0], [1], [0, 0, 1, 1], [], []>} : vector<16x128xbf16>, vector<128x128xbf16>, vector<16x128xf32> -> vector<16x128xf32>
      %c0_17 = arith.constant 0 : index
      %c0_18 = arith.constant 0 : index
      %23 = vector.load %arg7[%c0_17, %c0_18] : memref<1x128xf32, #tpu.memory_space<vmem>>, vector<1x128xf32>
      %24 = vector.broadcast %23 : vector<1x128xf32> to vector<16x128xf32>
      %25 = arith.addf %22, %24 : vector<16x128xf32>
      %26 = vector.extract_strided_slice %25 {offsets = [0, 0], sizes = [16, 1], strides = [1, 1]} : vector<16x128xf32> to vector<16x1xf32>
      %cst_19 = arith.constant 0.000000e+00 : f32
      %27 = vector.broadcast %cst_19 : f32 to vector<16x1xf32>
      %28 = arith.subf %27, %26 : vector<16x1xf32>
      %29 = math.exp %28 : vector<16x1xf32>
      %cst_20 = arith.constant 1.000000e+00 : f32
      %30 = vector.broadcast %cst_20 : f32 to vector<16x1xf32>
      %31 = arith.addf %30, %29 : vector<16x1xf32>
      %cst_21 = arith.constant 1.000000e+00 : f32
      %32 = vector.broadcast %cst_21 : f32 to vector<16x1xf32>
      %33 = arith.divf %32, %31 : vector<16x1xf32>
      %c0_22 = arith.constant 0 : index
      %c0_23 = arith.constant 0 : index
      %34 = vector.load %arg14[%c0_22, %c0_23] : memref<16x1xf32, #tpu.memory_space<vmem>>, vector<16x1xf32>
      tpu.vector_store %arg14[%c0_22, %c0_23], %33 {strides = array<i32>} : memref<16x1xf32, #tpu.memory_space<vmem>>, vector<16x1xf32>,
      %cst_24 = arith.constant 1.000000e+00 : f32
      %35 = vector.broadcast %cst_24 : f32 to vector<16x1xf32>
      %36 = arith.subf %35, %33 : vector<16x1xf32>
      %c0_25 = arith.constant 0 : index
      %c0_26 = arith.constant 0 : index
      %37 = vector.load %arg11[%c0_25, %c0_26] : memref<16x8xf32, #tpu.memory_space<vmem>>, vector<16x8xf32>
      %38 = vector.broadcast %36 : vector<16x1xf32> to vector<16x8xf32>
      %39 = arith.mulf %38, %37 : vector<16x8xf32>
      %c0_27 = arith.constant 0 : index
      %c0_28 = arith.constant 0 : index
      %40 = vector.load %arg15[%c0_27, %c0_28] : memref<16x8xf32, #tpu.memory_space<vmem>>, vector<16x8xf32>
      tpu.vector_store %arg15[%c0_27, %c0_28], %39 {strides = array<i32>} : memref<16x8xf32, #tpu.memory_space<vmem>>, vector<16x8xf32>,
      %cst_29 = arith.constant 0xFF800000 : f32
      %41 = vector.broadcast %cst_29 : f32 to vector<16x1xf32>
      %c0_30 = arith.constant 0 : index
      %c0_31 = arith.constant 0 : index
      %42 = vector.load %arg16[%c0_30, %c0_31] : memref<16x1xf32, #tpu.memory_space<vmem>>, vector<16x1xf32>
      tpu.vector_store %arg16[%c0_30, %c0_31], %41 {strides = array<i32>} : memref<16x1xf32, #tpu.memory_space<vmem>>, vector<16x1xf32>,
      %cst_32 = arith.constant 0.000000e+00 : f32
      %43 = vector.broadcast %cst_32 : f32 to vector<16x1xf32>
      %c0_33 = arith.constant 0 : index
      %c0_34 = arith.constant 0 : index
      %44 = vector.load %arg17[%c0_33, %c0_34] : memref<16x1xf32, #tpu.memory_space<vmem>>, vector<16x1xf32>
      tpu.vector_store %arg17[%c0_33, %c0_34], %43 {strides = array<i32>} : memref<16x1xf32, #tpu.memory_space<vmem>>, vector<16x1xf32>,
    } else {
    }
    %c0_i32_2 = arith.constant 0 : i32
    %5 = arith.cmpi eq, %arg1, %c0_i32_2 : i32
    %6 = arith.extui %5 : i1 to i32
    %c0_i32_3 = arith.constant 0 : i32
    %7 = arith.cmpi ne, %6, %c0_i32_3 : i32
    scf.if %7 {
      %c0 = arith.constant 0 : index
      %c0_5 = arith.constant 0 : index
      %11 = vector.load %arg13[%c0, %c0_5] : memref<16x128xbf16, #tpu.memory_space<vmem>>, vector<16x128xbf16>
      %c0_6 = arith.constant 0 : index
      %c0_7 = arith.constant 0 : index
      %12 = vector.load %arg8[%c0_6, %c0_7] : memref<128x256xbf16, #tpu.memory_space<vmem>>, vector<128x256xbf16>
      %cst = arith.constant dense<0.000000e+00> : vector<16x256xf32>
      %13 = tpu.matmul %11, %12, %cst {dimension_numbers = #tpu.dot_dimension_numbers<[1], [0], [0], [1], [0, 0, 1, 1], [], []>} : vector<16x128xbf16>, vector<128x256xbf16>, vector<16x256xf32> -> vector<16x256xf32>
      %c0_8 = arith.constant 0 : index
      %c0_9 = arith.constant 0 : index
      %14 = vector.load %arg9[%c0_8, %c0_9] : memref<1x256xf32, #tpu.memory_space<vmem>>, vector<1x256xf32>
      %15 = vector.broadcast %14 : vector<1x256xf32> to vector<16x256xf32>
      %16 = arith.addf %13, %15 : vector<16x256xf32>
      %17 = arith.index_cast %arg2 : i32 to index
      %c0_10 = arith.constant 0 : index
      %c0_11 = arith.constant 0 : index
      %18 = vector.load %arg18[%17, %c0_10, %c0_11] : memref<1x16x256xf32, #tpu.memory_space<vmem>>, vector<1x16x256xf32>
      %19 = vector.shape_cast %18 : vector<1x16x256xf32> to vector<16x256xf32>
      %20 = vector.shape_cast %16 : vector<16x256xf32> to vector<1x16x256xf32>
      tpu.vector_store %arg18[%17, %c0_10, %c0_11], %20 {strides = array<i32>} : memref<1x16x256xf32, #tpu.memory_space<vmem>>, vector<1x16x256xf32>,
      %c0_12 = arith.constant 0 : index
      %c0_13 = arith.constant 0 : index
      %21 = vector.load %arg16[%c0_12, %c0_13] : memref<16x1xf32, #tpu.memory_space<vmem>>, vector<16x1xf32>
      %cst_14 = arith.constant dense<0xFF800000> : vector<16xf32>
      %22 = vector.multi_reduction <maximumf>, %16, %cst_14 [1] : vector<16x256xf32> to vector<16xf32>
      %23 = vector.shape_cast %22 : vector<16xf32> to vector<16x1xf32>
      %24 = arith.maximumf %21, %23 : vector<16x1xf32>
      %c0_15 = arith.constant 0 : index
      %c0_16 = arith.constant 0 : index
      %25 = vector.load %arg17[%c0_15, %c0_16] : memref<16x1xf32, #tpu.memory_space<vmem>>, vector<16x1xf32>
      %26 = arith.subf %21, %24 : vector<16x1xf32>
      %27 = math.exp %26 : vector<16x1xf32>
      %28 = arith.mulf %25, %27 : vector<16x1xf32>
      %29 = vector.broadcast %24 : vector<16x1xf32> to vector<16x256xf32>
      %30 = arith.subf %16, %29 : vector<16x256xf32>
      %31 = math.exp %30 : vector<16x256xf32>
      %cst_17 = arith.constant dense<0.000000e+00> : vector<16xf32>
      %32 = vector.multi_reduction <add>, %31, %cst_17 [1] : vector<16x256xf32> to vector<16xf32>
      %33 = vector.shape_cast %32 : vector<16xf32> to vector<16x1xf32>
      %34 = arith.addf %28, %33 : vector<16x1xf32>
      %c0_18 = arith.constant 0 : index
      %c0_19 = arith.constant 0 : index
      %35 = vector.load %arg17[%c0_18, %c0_19] : memref<16x1xf32, #tpu.memory_space<vmem>>, vector<16x1xf32>
      tpu.vector_store %arg17[%c0_18, %c0_19], %34 {strides = array<i32>} : memref<16x1xf32, #tpu.memory_space<vmem>>, vector<16x1xf32>,
      %c0_20 = arith.constant 0 : index
      %c0_21 = arith.constant 0 : index
      %36 = vector.load %arg16[%c0_20, %c0_21] : memref<16x1xf32, #tpu.memory_space<vmem>>, vector<16x1xf32>
      tpu.vector_store %arg16[%c0_20, %c0_21], %24 {strides = array<i32>} : memref<16x1xf32, #tpu.memory_space<vmem>>, vector<16x1xf32>,
    } else {
    }
    %c1_i32 = arith.constant 1 : i32
    %8 = arith.cmpi eq, %arg1, %c1_i32 : i32
    %9 = arith.extui %8 : i1 to i32
    %c0_i32_4 = arith.constant 0 : i32
    %10 = arith.cmpi ne, %9, %c0_i32_4 : i32
    scf.if %10 {
      %11 = arith.index_cast %arg2 : i32 to index
      %c0 = arith.constant 0 : index
      %c0_5 = arith.constant 0 : index
      %12 = vector.load %arg18[%11, %c0, %c0_5] : memref<1x16x256xf32, #tpu.memory_space<vmem>>, vector<1x16x256xf32>
      %13 = vector.shape_cast %12 : vector<1x16x256xf32> to vector<16x256xf32>
      %c0_6 = arith.constant 0 : index
      %c0_7 = arith.constant 0 : index
      %14 = vector.load %arg16[%c0_6, %c0_7] : memref<16x1xf32, #tpu.memory_space<vmem>>, vector<16x1xf32>
      %c0_8 = arith.constant 0 : index
      %c0_9 = arith.constant 0 : index
      %15 = vector.load %arg17[%c0_8, %c0_9] : memref<16x1xf32, #tpu.memory_space<vmem>>, vector<16x1xf32>
      %16 = tpu.reciprocal %15 {approx = true} : vector<16x1xf32> -> vector<16x1xf32>
      %17 = arith.mulf %15, %16 : vector<16x1xf32>
      %cst = arith.constant 2.000000e+00 : f32
      %18 = vector.broadcast %cst : f32 to vector<16x1xf32>
      %19 = arith.subf %18, %17 : vector<16x1xf32>
      %20 = arith.mulf %16, %19 : vector<16x1xf32>
      %c0_10 = arith.constant 0 : index
      %c0_11 = arith.constant 0 : index
      %21 = vector.load %arg14[%c0_10, %c0_11] : memref<16x1xf32, #tpu.memory_space<vmem>>, vector<16x1xf32>
      %c0_12 = arith.constant 0 : index
      %c0_13 = arith.constant 0 : index
      %22 = vector.load %arg10[%c0_12, %c0_13] : memref<16x8xi32, #tpu.memory_space<vmem>>, vector<16x8xi32>
      %c0_14 = arith.constant 0 : index
      %c0_15 = arith.constant 0 : index
      %23 = vector.load %arg15[%c0_14, %c0_15] : memref<16x8xf32, #tpu.memory_space<vmem>>, vector<16x8xf32>
      %c256_i32 = arith.constant 256 : i32
      %24 = arith.muli %arg2, %c256_i32 : i32
      %25 = vector.broadcast %14 : vector<16x1xf32> to vector<16x256xf32>
      %26 = arith.subf %13, %25 : vector<16x256xf32>
      %27 = math.exp %26 : vector<16x256xf32>
      %28 = vector.broadcast %20 : vector<16x1xf32> to vector<16x256xf32>
      %29 = arith.mulf %27, %28 : vector<16x256xf32>
      %30 = vector.broadcast %21 : vector<16x1xf32> to vector<16x256xf32>
      %31 = arith.mulf %30, %29 : vector<16x256xf32>
      %32 = tpu.iota {dimensions = array<i32: 1>} : vector<16x256xi32>
      %c0_i32_16 = arith.constant 0 : i32
      %33 = arith.addi %24, %c0_i32_16 : i32
      %34 = vector.broadcast %33 : i32 to vector<16x256xi32>
      %35 = arith.addi %32, %34 : vector<16x256xi32>
      %36 = vector.extract_strided_slice %22 {offsets = [0, 0], sizes = [16, 1], strides = [1, 1]} : vector<16x8xi32> to vector<16x1xi32>
      %37 = vector.broadcast %36 : vector<16x1xi32> to vector<16x256xi32>
      %38 = arith.cmpi eq, %35, %37 : vector<16x256xi32>
      %39 = vector.extract_strided_slice %23 {offsets = [0, 0], sizes = [16, 1], strides = [1, 1]} : vector<16x8xf32> to vector<16x1xf32>
      %cst_17 = arith.constant 0.000000e+00 : f32
      %40 = vector.shape_cast %39 : vector<16x1xf32> to vector<16x1xf32>
      %41 = vector.broadcast %40 : vector<16x1xf32> to vector<16x256xf32>
      %42 = vector.broadcast %cst_17 : f32 to vector<16x256xf32>
      %43 = arith.select %38, %41, %42 : vector<16x256xi1>, vector<16x256xf32>
      %44 = arith.addf %31, %43 : vector<16x256xf32>
      %45 = vector.extract_strided_slice %22 {offsets = [0, 1], sizes = [16, 1], strides = [1, 1]} : vector<16x8xi32> to vector<16x1xi32>
      %46 = vector.broadcast %45 : vector<16x1xi32> to vector<16x256xi32>
      %47 = arith.cmpi eq, %35, %46 : vector<16x256xi32>
      %48 = vector.extract_strided_slice %23 {offsets = [0, 1], sizes = [16, 1], strides = [1, 1]} : vector<16x8xf32> to vector<16x1xf32>
      %cst_18 = arith.constant 0.000000e+00 : f32
      %49 = vector.shape_cast %48 : vector<16x1xf32> to vector<16x1xf32>
      %50 = vector.broadcast %49 : vector<16x1xf32> to vector<16x256xf32>
      %51 = vector.broadcast %cst_18 : f32 to vector<16x256xf32>
      %52 = arith.select %47, %50, %51 : vector<16x256xi1>, vector<16x256xf32>
      %53 = arith.addf %44, %52 : vector<16x256xf32>
      %54 = vector.extract_strided_slice %22 {offsets = [0, 2], sizes = [16, 1], strides = [1, 1]} : vector<16x8xi32> to vector<16x1xi32>
      %55 = vector.broadcast %54 : vector<16x1xi32> to vector<16x256xi32>
      %56 = arith.cmpi eq, %35, %55 : vector<16x256xi32>
      %57 = vector.extract_strided_slice %23 {offsets = [0, 2], sizes = [16, 1], strides = [1, 1]} : vector<16x8xf32> to vector<16x1xf32>
      %cst_19 = arith.constant 0.000000e+00 : f32
      %58 = vector.shape_cast %57 : vector<16x1xf32> to vector<16x1xf32>
      %59 = vector.broadcast %58 : vector<16x1xf32> to vector<16x256xf32>
      %60 = vector.broadcast %cst_19 : f32 to vector<16x256xf32>
      %61 = arith.select %56, %59, %60 : vector<16x256xi1>, vector<16x256xf32>
      %62 = arith.addf %53, %61 : vector<16x256xf32>
      %63 = vector.extract_strided_slice %22 {offsets = [0, 3], sizes = [16, 1], strides = [1, 1]} : vector<16x8xi32> to vector<16x1xi32>
      %64 = vector.broadcast %63 : vector<16x1xi32> to vector<16x256xi32>
      %65 = arith.cmpi eq, %35, %64 : vector<16x256xi32>
      %66 = vector.extract_strided_slice %23 {offsets = [0, 3], sizes = [16, 1], strides = [1, 1]} : vector<16x8xf32> to vector<16x1xf32>
      %cst_20 = arith.constant 0.000000e+00 : f32
      %67 = vector.shape_cast %66 : vector<16x1xf32> to vector<16x1xf32>
      %68 = vector.broadcast %67 : vector<16x1xf32> to vector<16x256xf32>
      %69 = vector.broadcast %cst_20 : f32 to vector<16x256xf32>
      %70 = arith.select %65, %68, %69 : vector<16x256xi1>, vector<16x256xf32>
      %71 = arith.addf %62, %70 : vector<16x256xf32>
      %72 = vector.extract_strided_slice %22 {offsets = [0, 4], sizes = [16, 1], strides = [1, 1]} : vector<16x8xi32> to vector<16x1xi32>
      %73 = vector.broadcast %72 : vector<16x1xi32> to vector<16x256xi32>
      %74 = arith.cmpi eq, %35, %73 : vector<16x256xi32>
      %75 = vector.extract_strided_slice %23 {offsets = [0, 4], sizes = [16, 1], strides = [1, 1]} : vector<16x8xf32> to vector<16x1xf32>
      %cst_21 = arith.constant 0.000000e+00 : f32
      %76 = vector.shape_cast %75 : vector<16x1xf32> to vector<16x1xf32>
      %77 = vector.broadcast %76 : vector<16x1xf32> to vector<16x256xf32>
      %78 = vector.broadcast %cst_21 : f32 to vector<16x256xf32>
      %79 = arith.select %74, %77, %78 : vector<16x256xi1>, vector<16x256xf32>
      %80 = arith.addf %71, %79 : vector<16x256xf32>
      %81 = vector.extract_strided_slice %22 {offsets = [0, 5], sizes = [16, 1], strides = [1, 1]} : vector<16x8xi32> to vector<16x1xi32>
      %82 = vector.broadcast %81 : vector<16x1xi32> to vector<16x256xi32>
      %83 = arith.cmpi eq, %35, %82 : vector<16x256xi32>
      %84 = vector.extract_strided_slice %23 {offsets = [0, 5], sizes = [16, 1], strides = [1, 1]} : vector<16x8xf32> to vector<16x1xf32>
      %cst_22 = arith.constant 0.000000e+00 : f32
      %85 = vector.shape_cast %84 : vector<16x1xf32> to vector<16x1xf32>
      %86 = vector.broadcast %85 : vector<16x1xf32> to vector<16x256xf32>
      %87 = vector.broadcast %cst_22 : f32 to vector<16x256xf32>
      %88 = arith.select %83, %86, %87 : vector<16x256xi1>, vector<16x256xf32>
      %89 = arith.addf %80, %88 : vector<16x256xf32>
      %90 = vector.extract_strided_slice %22 {offsets = [0, 6], sizes = [16, 1], strides = [1, 1]} : vector<16x8xi32> to vector<16x1xi32>
      %91 = vector.broadcast %90 : vector<16x1xi32> to vector<16x256xi32>
      %92 = arith.cmpi eq, %35, %91 : vector<16x256xi32>
      %93 = vector.extract_strided_slice %23 {offsets = [0, 6], sizes = [16, 1], strides = [1, 1]} : vector<16x8xf32> to vector<16x1xf32>
      %cst_23 = arith.constant 0.000000e+00 : f32
      %94 = vector.shape_cast %93 : vector<16x1xf32> to vector<16x1xf32>
      %95 = vector.broadcast %94 : vector<16x1xf32> to vector<16x256xf32>
      %96 = vector.broadcast %cst_23 : f32 to vector<16x256xf32>
      %97 = arith.select %92, %95, %96 : vector<16x256xi1>, vector<16x256xf32>
      %98 = arith.addf %89, %97 : vector<16x256xf32>
      %99 = vector.extract_strided_slice %22 {offsets = [0, 7], sizes = [16, 1], strides = [1, 1]} : vector<16x8xi32> to vector<16x1xi32>
      %100 = vector.broadcast %99 : vector<16x1xi32> to vector<16x256xi32>
      %101 = arith.cmpi eq, %35, %100 : vector<16x256xi32>
      %102 = vector.extract_strided_slice %23 {offsets = [0, 7], sizes = [16, 1], strides = [1, 1]} : vector<16x8xf32> to vector<16x1xf32>
      %cst_24 = arith.constant 0.000000e+00 : f32
      %103 = vector.shape_cast %102 : vector<16x1xf32> to vector<16x1xf32>
      %104 = vector.broadcast %103 : vector<16x1xf32> to vector<16x256xf32>
      %105 = vector.broadcast %cst_24 : f32 to vector<16x256xf32>
      %106 = arith.select %101, %104, %105 : vector<16x256xi1>, vector<16x256xf32>
      %107 = arith.addf %98, %106 : vector<16x256xf32>
      %c0_25 = arith.constant 0 : index
      %c0_26 = arith.constant 0 : index
      %108 = vector.load %arg12[%c0_25, %c0_26] : memref<16x256xf32, #tpu.memory_space<vmem>>, vector<16x256xf32>
      tpu.vector_store %arg12[%c0_25, %c0_26], %107 {strides = array<i32>} : memref<16x256xf32, #tpu.memory_space<vmem>>, vector<16x256xf32>,
    } else {
    }
    return
  }
  func.func @transform_0(%arg0: i32, %arg1: i32, %arg2: i32) -> (i32, i32) {
    %c0_i32 = arith.constant 0 : i32
    %c0_i32_0 = arith.constant 0 : i32
    return %arg0, %c0_i32 : i32, i32
  }
  func.func @transform_1(%arg0: i32, %arg1: i32, %arg2: i32) -> (i32, i32) {
    %c0_i32 = arith.constant 0 : i32
    %c0_i32_0 = arith.constant 0 : i32
    %c0_i32_1 = arith.constant 0 : i32
    return %c0_i32, %c0_i32_0 : i32, i32
  }
  func.func @transform_2(%arg0: i32, %arg1: i32, %arg2: i32) -> (i32, i32) {
    %c0_i32 = arith.constant 0 : i32
    %c0_i32_0 = arith.constant 0 : i32
    %c0_i32_1 = arith.constant 0 : i32
    return %c0_i32, %c0_i32_0 : i32, i32
  }
  func.func @transform_3(%arg0: i32, %arg1: i32, %arg2: i32) -> (i32, i32) {
    %c0_i32 = arith.constant 0 : i32
    %c0_i32_0 = arith.constant 0 : i32
    %c0_i32_1 = arith.constant 0 : i32
    return %c0_i32, %c0_i32_0 : i32, i32
  }
  func.func @transform_4(%arg0: i32, %arg1: i32, %arg2: i32) -> (i32, i32) {
    %c0_i32 = arith.constant 0 : i32
    %c0_i32_0 = arith.constant 0 : i32
    %c0_i32_1 = arith.constant 0 : i32
    return %c0_i32, %c0_i32_0 : i32, i32
  }
  func.func @transform_5(%arg0: i32, %arg1: i32, %arg2: i32) -> (i32, i32) {
    %c1_i32 = arith.constant 1 : i32
    %0 = arith.subi %c1_i32, %arg1 : i32
    %1 = arith.muli %arg2, %0 : i32
    %c0_i32 = arith.constant 0 : i32
    %c0_i32_0 = arith.constant 0 : i32
    return %c0_i32, %1 : i32, i32
  }
  func.func @transform_6(%arg0: i32, %arg1: i32, %arg2: i32) -> (i32, i32) {
    %c1_i32 = arith.constant 1 : i32
    %0 = arith.subi %c1_i32, %arg1 : i32
    %1 = arith.muli %arg2, %0 : i32
    %c0_i32 = arith.constant 0 : i32
    %c0_i32_0 = arith.constant 0 : i32
    return %c0_i32, %1 : i32, i32
  }
  func.func @transform_7(%arg0: i32, %arg1: i32, %arg2: i32) -> (i32, i32) {
    %c0_i32 = arith.constant 0 : i32
    %c0_i32_0 = arith.constant 0 : i32
    return %arg0, %c0_i32 : i32, i32
  }
  func.func @transform_8(%arg0: i32, %arg1: i32, %arg2: i32) -> (i32, i32) {
    %c0_i32 = arith.constant 0 : i32
    %c0_i32_0 = arith.constant 0 : i32
    return %arg0, %c0_i32 : i32, i32
  }
  func.func @transform_9(%arg0: i32, %arg1: i32, %arg2: i32) -> (i32, i32) {
    %0 = arith.muli %arg2, %arg1 : i32
    %c0_i32 = arith.constant 0 : i32
    return %arg0, %0 : i32, i32
  }
}

</mosaic_0001>

<llo_original>
// kernel: tpu_custom_call.1
$region0: #{tpu_custom_call.1}
  #allocation0 [shape = 'u32[]', space=smem, size = 0x4, offset = 0x4, fixed_abs, tag = 'smem constant byte address 0x4 - core index']
  #allocation1 [shape = 'u32[72,128]{1,0:T(1,128)}', space=vmem, size = 0x9000, scoped, tag = 'internal scratch']
  #allocation2 [shape = 'bf16[16,128]{1,0:T(8,128)(2,1)}', space=vmem, size = 0x1000, scoped, tag = 'scratch operand']
  #allocation3 [shape = 'f32[16,1]{1,0:T(8,128)}', space=vmem, size = 0x2000, scoped, tag = 'scratch operand']
  #allocation4 [shape = 'f32[16,8]{1,0:T(8,128)}', space=vmem, size = 0x2000, scoped, tag = 'scratch operand']
  #allocation5 [shape = 'f32[16,1]{1,0:T(8,128)}', space=vmem, size = 0x2000, scoped, tag = 'scratch operand']
  #allocation6 [shape = 'f32[16,1]{1,0:T(8,128)}', space=vmem, size = 0x2000, scoped, tag = 'scratch operand']
  #allocation7 [shape = 'f32[1,16,256]{2,1,0:T(8,128)}', space=vmem, size = 0x4000, scoped, tag = 'scratch operand']
  %s0 = inlined_call_operand.vmem [shape: bf16[16,128], index: 0, kind: input, shape index: {}]
  %s1 = inlined_call_operand.hbm [shape: bf16[128,128], index: 1, kind: input, shape index: {}]
  %s2 = inlined_call_operand.vmem [shape: f32[1,128], index: 2, kind: input, shape index: {}]
  %s3 = inlined_call_operand.hbm [shape: bf16[128,128], index: 3, kind: input, shape index: {}]
  %s4 = inlined_call_operand.vmem [shape: f32[1,128], index: 4, kind: input, shape index: {}]
  %s5 = inlined_call_operand.hbm [shape: bf16[128,256], index: 5, kind: input, shape index: {}]
  %s6 = inlined_call_operand.vmem [shape: f32[1,256], index: 6, kind: input, shape index: {}]
  %s7 = inlined_call_operand.vmem [shape: s32[16,8], index: 7, kind: input, shape index: {}]
  %s8 = inlined_call_operand.vmem [shape: f32[16,8], index: 8, kind: input, shape index: {}]
  %s9 = inlined_call_operand.hbm [shape: f32[16,256], index: 9, kind: output, shape index: {}]
  %s10 = sld [smem:[#allocation0]]
  $region93: #{tpu_custom_call.1} parent=0
    _
  %s12 = ssub.s32 1, %s10
  %s13 = scalar_select 0, %s12, %s10
  $region1: #{tpu_custom_call.1} parent=0
    #allocation8 [shape = 'u8[32768]{0}', space=vmem, size = 0x8000, scoped, tag = 'input window, operand 1, single buffered']
    #allocation9 [shape = 's32[2]{0}', space=sflag, size = 0x8, scoped, tag = 'scoped memory for tpu_custom_call.1']
    #allocation10 [shape = 's32[2]{0}', space=sflag, size = 0x8, scoped, tag = 'scoped memory for tpu_custom_call.1']
    #allocation11 [shape = 'u8[32768]{0}', space=vmem, size = 0x8000, scoped, tag = 'input window, operand 3, single buffered']
    #allocation12 [shape = 's32[1]{0}', space=sflag, size = 0x4, scoped, tag = 'scoped memory for tpu_custom_call.1']
    #allocation13 [shape = 'u8[131072]{0}', space=vmem, size = 0x20000, scoped, tag = 'input window, operand 5']
    #allocation14 [shape = 'u8[32768]{0}', space=vmem, size = 0x8000, scoped, tag = 'output window, operand 0']
    %14 = vsyncpa [#allocation9], 0
    %15 = vsyncpa [#allocation12], 0
    %16 = vsyncpa [#allocation10], 0
    %s17 = scalar_lea.sflag [#allocation10], 1
    %18 = vsyncpa %s17, 0
    loop: start=0, step=1, limit=4
    $region2: #{tpu_custom_call.1} parent=1 // loop_pre_header
      _
    $region3: #{tpu_custom_call.1} parent=1 // loop_header
      %s20 = sphi 0, %s24
      %p21 = scmp.ge.s32.totalorder %s20, 4
      %s27 = sphi 0, %s46
      %s28 = sphi 0, %s42
      %s29 = sphi 0, %s38
      %s30 = sphi 0, %s27
      %s31 = sphi 0, %s28
      %s32 = sphi 0, %s29
      %s33 = sphi 0, %s30
      %s34 = sphi 0, %s31
      %s35 = sphi 0, %s32
      %s49 = sphi 0, %s51
      %s52 = sphi 0, %s49
      %s53 = sphi 0, %s52
      %s69 = sphi 0, %s53
      %s73 = sphi 0, %s73
      %s75 = sphi 0, %s73
      %s76 = sphi 0, %s75
      %s90 = sphi 0, %s76
      %s94 = sphi 0, %s94
      %s96 = sphi 0, %s94
      %s97 = sphi 0, %s96
      %s111 = sphi 0, %s97
      %s115 = sphi 0, %s115
      %s117 = sphi 0, %s115
      %s118 = sphi 0, %s117
      %s132 = sphi 0, %s118
      %s136 = sphi 0, %s136
      %s138 = sphi 0, %s136
      %s139 = sphi 0, %s138
      %s153 = sphi 0, %s139
      %s163 = sphi 0, %s165
      %s166 = sphi 0, %s163
      %s167 = sphi 0, %s166
      %s183 = sphi 0, %s167
      %s193 = sphi 0, %s195
      %s196 = sphi 0, %s193
      %s197 = sphi 0, %s196
      %s213 = sphi 0, %s197
      %s219 = sphi 0, %s221
      %s222 = sphi 0, %s219
      %s223 = sphi 0, %s222
      %s239 = sphi 0, %s223
      %s245 = sphi 0, %s247
      %s248 = sphi 0, %s245
      %s249 = sphi 0, %s248
      %s265 = sphi 0, %s249
      %s275 = sphi 0, %s277
      %s278 = sphi 0, %s275
      %s279 = sphi 0, %s278
      %s295 = sphi 0, %s279
    $region4: #{tpu_custom_call.1} parent=1 // loop_header_branch
      %23 = sbr.rel (%p21) target = $region8
    $region5: #{tpu_custom_call.1} parent=1 // loop_body
      %s25 = ssub.s32 %s20, 1
      %s26 = ssub.s32 %s20, 2
      %s36 = sadd.s32 1, %s29
      %p37 = scmp.ge.s32.totalorder %s36, 1
      %s38 = scalar_select %p37, 0, %s36
      %s39 = sadd.s32 1, %s28
      %s40 = scalar_select %p37, %s39, %s28
      %p41 = scmp.ge.s32.totalorder %s40, 2
      %s42 = scalar_select %p41, 0, %s40
      %s43 = sadd.s32 1, %s27
      %s44 = scalar_select %p41, %s43, %s27
      %p45 = scmp.ge.s32.totalorder %s44, 1
      %s46 = scalar_select %p45, 0, %s44
      %s47 = ssub.s32 %s27, %s46
      %p48 = scmp.eq.s32.totalorder %s47, 0
      %s50 = sadd.s32 %s49, 1
      %s51 = scalar_select %p48, %s49, %s50
      %p54 = pneg %p48
      %p55 = scmp.eq.s32.totalorder %s20, 1
      %p56 = por %p54, %p55
      %p57 = scmp.ne.s32.totalorder %s49, %s52
      %p58 = scmp.eq.s32.totalorder %s20, 0
      %p59 = por %p57, %p58
      %p60 = scmp.ne.s32.totalorder %s49, %s52
      %p61 = scmp.eq.s32.totalorder %s25, 1
      %p62 = por %p60, %p61
      %p63 = scmp.ne.s32.totalorder %s52, %s53
      %p64 = scmp.eq.s32.totalorder %s25, 0
      %p65 = por %p63, %p64
      %p66 = scmp.ne.s32.totalorder %s52, %s53
      %p67 = scmp.eq.s32.totalorder %s26, 1
      %p68 = por %p66, %p67
      %p70 = scmp.ne.s32.totalorder %s53, %s69
      %p71 = scmp.eq.s32.totalorder %s26, 0
      %p72 = por %p70, %p71
      %s74 = sadd.s32 %s73, 1
      %p77 = scmp.eq.s32.totalorder %s20, 1
      %p78 = scmp.ne.s32.totalorder %s73, %s75
      %p79 = scmp.eq.s32.totalorder %s20, 0
      %p80 = por %p78, %p79
      %p81 = scmp.ne.s32.totalorder %s73, %s75
      %p82 = scmp.eq.s32.totalorder %s25, 1
      %p83 = por %p81, %p82
      %p84 = scmp.ne.s32.totalorder %s75, %s76
      %p85 = scmp.eq.s32.totalorder %s25, 0
      %p86 = por %p84, %p85
      %p87 = scmp.ne.s32.totalorder %s75, %s76
      %p88 = scmp.eq.s32.totalorder %s26, 1
      %p89 = por %p87, %p88
      %p91 = scmp.ne.s32.totalorder %s76, %s90
      %p92 = scmp.eq.s32.totalorder %s26, 0
      %p93 = por %p91, %p92
      %s95 = sadd.s32 %s94, 1
      %p98 = scmp.eq.s32.totalorder %s20, 1
      %p99 = scmp.ne.s32.totalorder %s94, %s96
      %p100 = scmp.eq.s32.totalorder %s20, 0
      %p101 = por %p99, %p100
      %p102 = scmp.ne.s32.totalorder %s94, %s96
      %p103 = scmp.eq.s32.totalorder %s25, 1
      %p104 = por %p102, %p103
      %p105 = scmp.ne.s32.totalorder %s96, %s97
      %p106 = scmp.eq.s32.totalorder %s25, 0
      %p107 = por %p105, %p106
      %p108 = scmp.ne.s32.totalorder %s96, %s97
      %p109 = scmp.eq.s32.totalorder %s26, 1
      %p110 = por %p108, %p109
      %p112 = scmp.ne.s32.totalorder %s97, %s111
      %p113 = scmp.eq.s32.totalorder %s26, 0
      %p114 = por %p112, %p113
      %s116 = sadd.s32 %s115, 1
      %p119 = scmp.eq.s32.totalorder %s20, 1
      %p120 = scmp.ne.s32.totalorder %s115, %s117
      %p121 = scmp.eq.s32.totalorder %s20, 0
      %p122 = por %p120, %p121
      %p123 = scmp.ne.s32.totalorder %s115, %s117
      %p124 = scmp.eq.s32.totalorder %s25, 1
      %p125 = por %p123, %p124
      %p126 = scmp.ne.s32.totalorder %s117, %s118
      %p127 = scmp.eq.s32.totalorder %s25, 0
      %p128 = por %p126, %p127
      %p129 = scmp.ne.s32.totalorder %s117, %s118
      %p130 = scmp.eq.s32.totalorder %s26, 1
      %p131 = por %p129, %p130
      %p133 = scmp.ne.s32.totalorder %s118, %s132
      %p134 = scmp.eq.s32.totalorder %s26, 0
      %p135 = por %p133, %p134
      %s137 = sadd.s32 %s136, 1
      %p140 = scmp.eq.s32.totalorder %s20, 1
      %p141 = scmp.ne.s32.totalorder %s136, %s138
      %p142 = scmp.eq.s32.totalorder %s20, 0
      %p143 = por %p141, %p142
      %p144 = scmp.ne.s32.totalorder %s136, %s138
      %p145 = scmp.eq.s32.totalorder %s25, 1
      %p146 = por %p144, %p145
      %p147 = scmp.ne.s32.totalorder %s138, %s139
      %p148 = scmp.eq.s32.totalorder %s25, 0
      %p149 = por %p147, %p148
      %p150 = scmp.ne.s32.totalorder %s138, %s139
      %p151 = scmp.eq.s32.totalorder %s26, 1
      %p152 = por %p150, %p151
      %p154 = scmp.ne.s32.totalorder %s139, %s153
      %p155 = scmp.eq.s32.totalorder %s26, 0
      %p156 = por %p154, %p155
      %s157 = ssub.s32 1, %s28
      %s158 = smul.u32 %s29, %s157
      %s159 = ssub.s32 1, %s42
      %s160 = smul.u32 %s38, %s159
      %s161 = ssub.s32 %s158, %s160
      %p162 = scmp.eq.s32.totalorder %s161, 0
      %s164 = sadd.s32 %s163, 1
      %s165 = scalar_select %p162, %s163, %s164
      %p168 = pneg %p162
      %p169 = scmp.eq.s32.totalorder %s20, 1
      %p170 = por %p168, %p169
      %p171 = scmp.ne.s32.totalorder %s163, %s166
      %p172 = scmp.eq.s32.totalorder %s20, 0
      %p173 = por %p171, %p172
      %p174 = scmp.ne.s32.totalorder %s163, %s166
      %p175 = scmp.eq.s32.totalorder %s25, 1
      %p176 = por %p174, %p175
      %p177 = scmp.ne.s32.totalorder %s166, %s167
      %p178 = scmp.eq.s32.totalorder %s25, 0
      %p179 = por %p177, %p178
      %p180 = scmp.ne.s32.totalorder %s166, %s167
      %p181 = scmp.eq.s32.totalorder %s26, 1
      %p182 = por %p180, %p181
      %p184 = scmp.ne.s32.totalorder %s167, %s183
      %p185 = scmp.eq.s32.totalorder %s26, 0
      %p186 = por %p184, %p185
      %s187 = ssub.s32 1, %s28
      %s188 = smul.u32 %s29, %s187
      %s189 = ssub.s32 1, %s42
      %s190 = smul.u32 %s38, %s189
      %s191 = ssub.s32 %s188, %s190
      %p192 = scmp.eq.s32.totalorder %s191, 0
      %s194 = sadd.s32 %s193, 1
      %s195 = scalar_select %p192, %s193, %s194
      %p198 = pneg %p192
      %p199 = scmp.eq.s32.totalorder %s20, 1
      %p200 = por %p198, %p199
      %p201 = scmp.ne.s32.totalorder %s193, %s196
      %p202 = scmp.eq.s32.totalorder %s20, 0
      %p203 = por %p201, %p202
      %p204 = scmp.ne.s32.totalorder %s193, %s196
      %p205 = scmp.eq.s32.totalorder %s25, 1
      %p206 = por %p204, %p205
      %p207 = scmp.ne.s32.totalorder %s196, %s197
      %p208 = scmp.eq.s32.totalorder %s25, 0
      %p209 = por %p207, %p208
      %p210 = scmp.ne.s32.totalorder %s196, %s197
      %p211 = scmp.eq.s32.totalorder %s26, 1
      %p212 = por %p210, %p211
      %p214 = scmp.ne.s32.totalorder %s197, %s213
      %p215 = scmp.eq.s32.totalorder %s26, 0
      %p216 = por %p214, %p215
      %s217 = ssub.s32 %s27, %s46
      %p218 = scmp.eq.s32.totalorder %s217, 0
      %s220 = sadd.s32 %s219, 1
      %s221 = scalar_select %p218, %s219, %s220
      %p224 = pneg %p218
      %p225 = scmp.eq.s32.totalorder %s20, 1
      %p226 = por %p224, %p225
      %p227 = scmp.ne.s32.totalorder %s219, %s222
      %p228 = scmp.eq.s32.totalorder %s20, 0
      %p229 = por %p227, %p228
      %p230 = scmp.ne.s32.totalorder %s219, %s222
      %p231 = scmp.eq.s32.totalorder %s25, 1
      %p232 = por %p230, %p231
      %p233 = scmp.ne.s32.totalorder %s222, %s223
      %p234 = scmp.eq.s32.totalorder %s25, 0
      %p235 = por %p233, %p234
      %p236 = scmp.ne.s32.totalorder %s222, %s223
      %p237 = scmp.eq.s32.totalorder %s26, 1
      %p238 = por %p236, %p237
      %p240 = scmp.ne.s32.totalorder %s223, %s239
      %p241 = scmp.eq.s32.totalorder %s26, 0
      %p242 = por %p240, %p241
      %s243 = ssub.s32 %s27, %s46
      %p244 = scmp.eq.s32.totalorder %s243, 0
      %s246 = sadd.s32 %s245, 1
      %s247 = scalar_select %p244, %s245, %s246
      %p250 = pneg %p244
      %p251 = scmp.eq.s32.totalorder %s20, 1
      %p252 = por %p250, %p251
      %p253 = scmp.ne.s32.totalorder %s245, %s248
      %p254 = scmp.eq.s32.totalorder %s20, 0
      %p255 = por %p253, %p254
      %p256 = scmp.ne.s32.totalorder %s245, %s248
      %p257 = scmp.eq.s32.totalorder %s25, 1
      %p258 = por %p256, %p257
      %p259 = scmp.ne.s32.totalorder %s248, %s249
      %p260 = scmp.eq.s32.totalorder %s25, 0
      %p261 = por %p259, %p260
      %p262 = scmp.ne.s32.totalorder %s248, %s249
      %p263 = scmp.eq.s32.totalorder %s26, 1
      %p264 = por %p262, %p263
      %p266 = scmp.ne.s32.totalorder %s249, %s265
      %p267 = scmp.eq.s32.totalorder %s26, 0
      %p268 = por %p266, %p267
      %s269 = smul.u32 %s29, %s28
      %s270 = smul.u32 %s38, %s42
      %s271 = ssub.s32 %s27, %s46
      %s272 = ssub.s32 %s269, %s270
      %s273 = sor.u32 %s271, %s272
      %p274 = scmp.eq.s32.totalorder %s273, 0
      %s276 = sadd.s32 %s275, 1
      %s277 = scalar_select %p274, %s275, %s276
      %p280 = pneg %p274
      %p281 = scmp.eq.s32.totalorder %s20, 1
      %p282 = por %p280, %p281
      %p283 = scmp.ne.s32.totalorder %s275, %s278
      %p284 = scmp.eq.s32.totalorder %s20, 0
      %p285 = por %p283, %p284
      %p286 = scmp.ne.s32.totalorder %s275, %s278
      %p287 = scmp.eq.s32.totalorder %s25, 1
      %p288 = por %p286, %p287
      %p289 = scmp.ne.s32.totalorder %s278, %s279
      %p290 = scmp.eq.s32.totalorder %s25, 0
      %p291 = por %p289, %p290
      %p292 = scmp.ne.s32.totalorder %s278, %s279
      %p293 = scmp.eq.s32.totalorder %s26, 1
      %p294 = por %p292, %p293
      %p296 = scmp.ne.s32.totalorder %s279, %s295
      %p297 = scmp.eq.s32.totalorder %s26, 0
      %p298 = por %p296, %p297
      %p299 = scmp.le.s32.totalorder 1, %s20
      %p300 = scmp.lt.s32.totalorder %s20, 3
      %p301 = pnand %p299, %p300
      %p302 = pneg %p301
      // Predicated region
      $region9: #{tpu_custom_call.1} parent=5 // pred_check
        _
      $region10: #{tpu_custom_call.1} parent=5 // pred_check_branch
        %304 = sbr.rel (%p301) target = $region12
      $region11: #{tpu_custom_call.1} parent=5 // pred_region
        %s305 = ssub.s32 %s20, 1
        // Predicated region
        $region13: #{tpu_custom_call.1} parent=11 // pred_check
          %p306 = pneg %p65
        $region14: #{tpu_custom_call.1} parent=11 // pred_check_branch
          %308 = sbr.rel (%p306) target = $region16
        $region15: #{tpu_custom_call.1} parent=11 // pred_region
          %s309 = smul.u32 2, %s30
          %p310 = scmp.lt.s32.totalorder %s309, 1
          %s311 = scalar_select %p310, %s309, 1
          %s312 = smul.addr %s311, 4
          %s313 = scalar_lea.vmem %s0, %s312
          %s314 = smul.u32 2, %s30
        $region16: #{tpu_custom_call.1} parent=11 // pred_fallthru
          _
        // Predicated region
        $region17: #{tpu_custom_call.1} parent=11 // pred_check
          %p315 = pneg %p86
        $region18: #{tpu_custom_call.1} parent=11 // pred_check_branch
          %317 = sbr.rel (%p315) target = $region20
        $region19: #{tpu_custom_call.1} parent=11 // pred_region
          %319 = vsyncadd [#allocation9], 0
          %s320 = sshll.u32 %s1, 4
          %s321 = int_to_ptr.hbm [resolvable:$true] %s320
          %s322 = sshll.u32 [#allocation8], 4
          %s323 = int_to_ptr.vmem [resolvable:$true] %s322
          %328 = dma.hbm_to_vmem [thread:$0]  %s321, 1024, %s323, [#allocation9], 64, 64, 4
        $region20: #{tpu_custom_call.1} parent=11 // pred_fallthru
          _
        // Predicated region
        $region21: #{tpu_custom_call.1} parent=11 // pred_check
          %p329 = pneg %p107
        $region22: #{tpu_custom_call.1} parent=11 // pred_check_branch
          %331 = sbr.rel (%p329) target = $region24
        $region23: #{tpu_custom_call.1} parent=11 // pred_region
          _
        $region24: #{tpu_custom_call.1} parent=11 // pred_fallthru
          _
        // Predicated region
        $region25: #{tpu_custom_call.1} parent=11 // pred_check
          %p332 = pneg %p128
        $region26: #{tpu_custom_call.1} parent=11 // pred_check_branch
          %334 = sbr.rel (%p332) target = $region28
        $region27: #{tpu_custom_call.1} parent=11 // pred_region
          %336 = vsyncadd [#allocation12], 0
          %s337 = sshll.u32 %s3, 4
          %s338 = int_to_ptr.hbm [resolvable:$true] %s337
          %s339 = sshll.u32 [#allocation11], 4
          %s340 = int_to_ptr.vmem [resolvable:$true] %s339
          %345 = dma.hbm_to_vmem [thread:$0]  %s338, 1024, %s340, [#allocation12], 64, 64, 4
        $region28: #{tpu_custom_call.1} parent=11 // pred_fallthru
          _
        // Predicated region
        $region29: #{tpu_custom_call.1} parent=11 // pred_check
          %p346 = pneg %p149
        $region30: #{tpu_custom_call.1} parent=11 // pred_check_branch
          %348 = sbr.rel (%p346) target = $region32
        $region31: #{tpu_custom_call.1} parent=11 // pred_region
          _
        $region32: #{tpu_custom_call.1} parent=11 // pred_fallthru
          _
        // Predicated region
        $region33: #{tpu_custom_call.1} parent=11 // pred_check
          %p349 = pneg %p235
        $region34: #{tpu_custom_call.1} parent=11 // pred_check_branch
          %351 = sbr.rel (%p349) target = $region36
        $region35: #{tpu_custom_call.1} parent=11 // pred_region
          %s352 = smul.u32 2, %s30
          %p353 = scmp.lt.s32.totalorder %s352, 1
          %s354 = scalar_select %p353, %s352, 1
          %s355 = smul.addr %s354, 8
          %s356 = scalar_lea.vmem %s7, %s355
          %s357 = smul.u32 2, %s30
        $region36: #{tpu_custom_call.1} parent=11 // pred_fallthru
          _
        // Predicated region
        $region37: #{tpu_custom_call.1} parent=11 // pred_check
          %p358 = pneg %p261
        $region38: #{tpu_custom_call.1} parent=11 // pred_check_branch
          %360 = sbr.rel (%p358) target = $region40
        $region39: #{tpu_custom_call.1} parent=11 // pred_region
          %s361 = smul.u32 2, %s30
          %p362 = scmp.lt.s32.totalorder %s361, 1
          %s363 = scalar_select %p362, %s361, 1
          %s364 = smul.addr %s363, 8
          %s365 = scalar_lea.vmem %s8, %s364
          %s366 = smul.u32 2, %s30
        $region40: #{tpu_custom_call.1} parent=11 // pred_fallthru
          _
      $region12: #{tpu_custom_call.1} parent=5 // pred_fallthru
        _
      %p367 = scmp.lt.s32.totalorder %s20, 2
      // Predicated region
      $region41: #{tpu_custom_call.1} parent=5 // pred_check
        %p368 = pneg %p367
      $region42: #{tpu_custom_call.1} parent=5 // pred_check_branch
        %370 = sbr.rel (%p368) target = $region44
      $region43: #{tpu_custom_call.1} parent=5 // pred_region
        // Predicated region
        $region45: #{tpu_custom_call.1} parent=43 // pred_check
          %p371 = pneg %p173
        $region46: #{tpu_custom_call.1} parent=43 // pred_check_branch
          %373 = sbr.rel (%p371) target = $region48
        $region47: #{tpu_custom_call.1} parent=43 // pred_region
          %s374 = sand.u32 %s20, 1
          %s375 = scalar_lea.sflag [#allocation9], %s374
          %s376 = sand.u32 %s163, 1
          %s377 = smul.addr %s376, 128
          %s378 = scalar_lea.vmem [#allocation13], %s377
          %s379 = ssub.s32 1, %s28
          %s380 = smul.u32 %s29, %s379
          %s381 = smul.u32 2, %s380
          %383 = vsyncadd %s375, 0
          %s384 = smul.addr %s381, 4
          %s385 = scalar_lea.hbm %s5, %s384
          %s386 = sshll.u32 %s385, 4
          %s387 = int_to_ptr.hbm [resolvable:$true] %s386
          %s388 = sshll.u32 %s378, 4
          %s389 = int_to_ptr.vmem [resolvable:$true] %s388
          %394 = dma.hbm_to_vmem [thread:$0]  %s387, 2048, %s389, %s375, 128, 128, 8
        $region48: #{tpu_custom_call.1} parent=43 // pred_fallthru
          _
        // Predicated region
        $region49: #{tpu_custom_call.1} parent=43 // pred_check
          %p395 = pneg %p203
        $region50: #{tpu_custom_call.1} parent=43 // pred_check_branch
          %397 = sbr.rel (%p395) target = $region52
        $region51: #{tpu_custom_call.1} parent=43 // pred_region
          %s398 = ssub.s32 1, %s28
          %s399 = smul.u32 %s29, %s398
          %s400 = smul.u32 2, %s399
          %p401 = scmp.lt.s32.totalorder %s400, 1
          %s402 = scalar_select %p401, %s400, 1
          %s403 = scalar_lea.vmem %s6, %s402
          %s404 = ssub.s32 1, %s28
          %s405 = smul.u32 %s29, %s404
          %s406 = smul.u32 2, %s405
        $region52: #{tpu_custom_call.1} parent=43 // pred_fallthru
          _
      $region44: #{tpu_custom_call.1} parent=5 // pred_fallthru
        _
      %p407 = scmp.le.s32.totalorder 1, %s20
      %p408 = scmp.lt.s32.totalorder %s20, 3
      %p409 = pnand %p407, %p408
      %p410 = pneg %p409
      // Predicated region
      $region53: #{tpu_custom_call.1} parent=5 // pred_check
        _
      $region54: #{tpu_custom_call.1} parent=5 // pred_check_branch
        %412 = sbr.rel (%p409) target = $region56
      $region55: #{tpu_custom_call.1} parent=5 // pred_region
        %s413 = ssub.s32 %s20, 1
        // Predicated region
        $region57: #{tpu_custom_call.1} parent=55 // pred_check
          %p414 = pneg %p86
        $region58: #{tpu_custom_call.1} parent=55 // pred_check_branch
          %416 = sbr.rel (%p414) target = $region60
        $region59: #{tpu_custom_call.1} parent=55 // pred_region
          %418 = dma.done [#allocation9], 1024
        $region60: #{tpu_custom_call.1} parent=55 // pred_fallthru
          _
        // Predicated region
        $region61: #{tpu_custom_call.1} parent=55 // pred_check
          %p419 = pneg %p128
        $region62: #{tpu_custom_call.1} parent=55 // pred_check_branch
          %421 = sbr.rel (%p419) target = $region64
        $region63: #{tpu_custom_call.1} parent=55 // pred_region
          %423 = dma.done [#allocation12], 1024
        $region64: #{tpu_custom_call.1} parent=55 // pred_fallthru
          _
        %s424 = sand.u32 %s25, 1
        %s425 = scalar_lea.sflag [#allocation9], %s424
        %s426 = sand.u32 %s166, 1
        %s427 = smul.addr %s426, 128
        %s428 = scalar_lea.vmem [#allocation13], %s427
        // Predicated region
        $region65: #{tpu_custom_call.1} parent=55 // pred_check
          %p429 = pneg %p179
        $region66: #{tpu_custom_call.1} parent=55 // pred_check_branch
          %431 = sbr.rel (%p429) target = $region68
        $region67: #{tpu_custom_call.1} parent=55 // pred_region
          %433 = dma.done %s425, 2048
        $region68: #{tpu_custom_call.1} parent=55 // pred_fallthru
          _
        %s434 = smul.u32 2, %s30
        %p435 = scmp.lt.s32.totalorder %s434, 1
        %s436 = scalar_select %p435, %s434, 1
        %s437 = smul.addr %s436, 4
        %s438 = scalar_lea.vmem %s0, %s437
        %p439 = pneg %p65
        %p440 = pneg %p62
        %p441 = pneg %p86
        %p442 = pneg %p83
        %p443 = pneg %p107
        %p444 = pneg %p104
        %p445 = pneg %p128
        %p446 = pneg %p125
        %p447 = pneg %p149
        %p448 = pneg %p146
        %s449 = sand.u32 %s25, 1
        %s450 = scalar_lea.sflag [#allocation9], %s449
        %s451 = sand.u32 %s166, 1
        %s452 = smul.addr %s451, 128
        %s453 = scalar_lea.vmem [#allocation13], %s452
        %p454 = pneg %p179
        %p455 = pneg %p176
        %s456 = ssub.s32 1, %s31
        %s457 = smul.u32 %s32, %s456
        %s458 = smul.u32 2, %s457
        %p459 = scmp.lt.s32.totalorder %s458, 1
        %s460 = scalar_select %p459, %s458, 1
        %s461 = scalar_lea.vmem %s6, %s460
        %p462 = pneg %p209
        %p463 = pneg %p206
        %s464 = smul.u32 2, %s30
        %p465 = scmp.lt.s32.totalorder %s464, 1
        %s466 = scalar_select %p465, %s464, 1
        %s467 = smul.addr %s466, 8
        %s468 = scalar_lea.vmem %s7, %s467
        %p469 = pneg %p235
        %p470 = pneg %p232
        %s471 = smul.u32 2, %s30
        %p472 = scmp.lt.s32.totalorder %s471, 1
        %s473 = scalar_select %p472, %s471, 1
        %s474 = smul.addr %s473, 8
        %s475 = scalar_lea.vmem %s8, %s474
        %p476 = pneg %p261
        %p477 = pneg %p258
        %p478 = pneg %p291
        %p479 = pneg %p288
        %s480 = sand.u32 %s278, 1
        %s481 = scalar_lea.sflag [#allocation10], %s480
        %s482 = sand.u32 %s278, 1
        %s483 = smul.addr %s482, 32
        %s484 = scalar_lea.vmem [#allocation14], %s483
        %s485 = smul.u32 2, %s30
        %p486 = scmp.lt.s32.totalorder %s485, 1
        %s487 = scalar_select %p486, %s485, 1
        %s488 = smul.addr %s487, 4
        %s489 = scalar_lea.vmem %s0, %s488
        %s490 = smul.u32 2, %s30
        %s491 = ssub.s32 1, %s31
        %s492 = smul.u32 %s32, %s491
        %s493 = smul.u32 2, %s492
        %s494 = ssub.s32 1, %s31
        %s495 = smul.u32 %s32, %s494
        %s496 = smul.u32 2, %s495
        %p497 = scmp.lt.s32.totalorder %s496, 1
        %s498 = scalar_select %p497, %s496, 1
        %s499 = scalar_lea.vmem %s6, %s498
        %s500 = ssub.s32 1, %s31
        %s501 = smul.u32 %s32, %s500
        %s502 = smul.u32 2, %s501
        %s503 = smul.u32 2, %s30
        %p504 = scmp.lt.s32.totalorder %s503, 1
        %s505 = scalar_select %p504, %s503, 1
        %s506 = smul.addr %s505, 8
        %s507 = scalar_lea.vmem %s7, %s506
        %s508 = smul.u32 2, %s30
        %s509 = smul.u32 2, %s30
        %p510 = scmp.lt.s32.totalorder %s509, 1
        %s511 = scalar_select %p510, %s509, 1
        %s512 = smul.addr %s511, 8
        %s513 = scalar_lea.vmem %s8, %s512
        %s514 = smul.u32 2, %s30
        %s515 = smul.u32 %s32, %s31
        %s516 = smul.u32 2, %s30
        %s517 = smul.u32 2, %s515
        %p518 = scmp.eq.s32.totalorder %s31, 0
        %p519 = scmp.eq.s32.totalorder %s32, 0
        %p520 = pnand %p518, %p519
        %p521 = pneg %p520
        // Predicated region
        $region69: #{tpu_custom_call.1} parent=55 // pred_check
          _
        $region70: #{tpu_custom_call.1} parent=55 // pred_check_branch
          %523 = sbr.rel (%p520) target = $region72
        $region71: #{tpu_custom_call.1} parent=55 // pred_region
          %v524 = vld [vmem:[%s489] sm:$0xf]
          %v525 = vld [vmem:[%s489 + $0x4] sm:$0xf]
          %v526 = vld [vmem:[#allocation8] sm:$0xf]
          %v527 = vld [vmem:[#allocation8 + $0x4] sm:$0xf]
          %v528 = vld [vmem:[#allocation8 + $0x8] sm:$0xf]
          %v529 = vld [vmem:[#allocation8 + $0xc] sm:$0xf]
          %v530 = vld [vmem:[#allocation8 + $0x10] sm:$0xf]
          %v531 = vld [vmem:[#allocation8 + $0x14] sm:$0xf]
          %v532 = vld [vmem:[#allocation8 + $0x18] sm:$0xf]
          %v533 = vld [vmem:[#allocation8 + $0x1c] sm:$0xf]
          %v534 = vld [vmem:[#allocation8 + $0x20] sm:$0xf]
          %v535 = vld [vmem:[#allocation8 + $0x24] sm:$0xf]
          %v536 = vld [vmem:[#allocation8 + $0x28] sm:$0xf]
          %v537 = vld [vmem:[#allocation8 + $0x2c] sm:$0xf]
          %v538 = vld [vmem:[#allocation8 + $0x30] sm:$0xf]
          %v539 = vld [vmem:[#allocation8 + $0x34] sm:$0xf]
          %v540 = vld [vmem:[#allocation8 + $0x38] sm:$0xf]
          %v541 = vld [vmem:[#allocation8 + $0x3c] sm:$0xf]
          %v542 = vld [vmem:[%s2] sm:$0x1]
          %v544 = vperm.slane %v542, 0
          %v548 = vunpack.c.l.b16 %v524
          %v549 = vunpack.c.l.b16 %v525
          %v550 = vpack.c.b16 %v549, %v548
          %v568 = vunpack.c.l.b16 %v526
          %v569 = vunpack.c.l.b16 %v527
          %v570 = vunpack.c.l.b16 %v528
          %v571 = vunpack.c.l.b16 %v529
          %v572 = vunpack.c.l.b16 %v530
          %v573 = vunpack.c.l.b16 %v531
          %v574 = vunpack.c.l.b16 %v532
          %v575 = vunpack.c.l.b16 %v533
          %v576 = vunpack.c.l.b16 %v534
          %v577 = vunpack.c.l.b16 %v535
          %v578 = vunpack.c.l.b16 %v536
          %v579 = vunpack.c.l.b16 %v537
          %v580 = vunpack.c.l.b16 %v538
          %v581 = vunpack.c.l.b16 %v539
          %v582 = vunpack.c.l.b16 %v540
          %v583 = vunpack.c.l.b16 %v541
          %v584 = vpack.c.b16 %v569, %v568
          %v585 = vpack.c.b16 %v571, %v570
          %v586 = vpack.c.b16 %v573, %v572
          %v587 = vpack.c.b16 %v575, %v574
          %v588 = vpack.c.b16 %v577, %v576
          %v589 = vpack.c.b16 %v579, %v578
          %v590 = vpack.c.b16 %v581, %v580
          %v591 = vpack.c.b16 %v583, %v582
          %600 = vmatpush.bf16.msra.mxu0 %v591
          %601 = vmatpush.bf16.msra.mxu0 %v590
          %602 = vmatpush.bf16.msra.mxu0 %v589
          %603 = vmatpush.bf16.msra.mxu0 %v588
          %604 = vmatpush.bf16.msra.mxu0 %v587
          %605 = vmatpush.bf16.msra.mxu0 %v586
          %606 = vmatpush.bf16.msra.mxu0 %v585
          %607 = vmatpush.bf16.msra.mxu0 %v584
          %608 = vmatmul.bf16.gmra.mxu0 %v550
          %v609 = vpop.f32.mrf.mxu0
          %v610 = vadd.f32 %v544, %v609
          %v611 = vpop.f32.mrf.mxu0
          %v612 = vadd.f32 %v544, %v611
          %613 = vdwg.mxu0
          %v614 = vtanh.pop %v610
          %v615 = vtanh.pop %v612
          %v616 = vpack.c.bf16 %v614, %v614
          %v617 = vpack.c.bf16 %v615, %v615
          %618 = vst [vmem:[#allocation2] sm:$0xf] %v616
          %619 = vst [vmem:[#allocation2 + $0x4] sm:$0xf] %v617
          %v620 = vld [vmem:[%s489] sm:$0xf]
          %v621 = vld [vmem:[%s489 + $0x4] sm:$0xf]
          %v622 = vld [vmem:[#allocation11] sm:$0xf]
          %v623 = vld [vmem:[#allocation11 + $0x4] sm:$0xf]
          %v624 = vld [vmem:[#allocation11 + $0x8] sm:$0xf]
          %v625 = vld [vmem:[#allocation11 + $0xc] sm:$0xf]
          %v626 = vld [vmem:[#allocation11 + $0x10] sm:$0xf]
          %v627 = vld [vmem:[#allocation11 + $0x14] sm:$0xf]
          %v628 = vld [vmem:[#allocation11 + $0x18] sm:$0xf]
          %v629 = vld [vmem:[#allocation11 + $0x1c] sm:$0xf]
          %v630 = vld [vmem:[#allocation11 + $0x20] sm:$0xf]
          %v631 = vld [vmem:[#allocation11 + $0x24] sm:$0xf]
          %v632 = vld [vmem:[#allocation11 + $0x28] sm:$0xf]
          %v633 = vld [vmem:[#allocation11 + $0x2c] sm:$0xf]
          %v634 = vld [vmem:[#allocation11 + $0x30] sm:$0xf]
          %v635 = vld [vmem:[#allocation11 + $0x34] sm:$0xf]
          %v636 = vld [vmem:[#allocation11 + $0x38] sm:$0xf]
          %v637 = vld [vmem:[#allocation11 + $0x3c] sm:$0xf]
          %v638 = vld [vmem:[%s4] sm:$0x1]
          %v640 = vperm.slane %v638, 0
          %v644 = vunpack.c.l.b16 %v620
          %v645 = vunpack.c.l.b16 %v621
          %v646 = vpack.c.b16 %v645, %v644
          %v664 = vunpack.c.l.b16 %v622
          %v665 = vunpack.c.l.b16 %v623
          %v666 = vunpack.c.l.b16 %v624
          %v667 = vunpack.c.l.b16 %v625
          %v668 = vunpack.c.l.b16 %v626
          %v669 = vunpack.c.l.b16 %v627
          %v670 = vunpack.c.l.b16 %v628
          %v671 = vunpack.c.l.b16 %v629
          %v672 = vunpack.c.l.b16 %v630
          %v673 = vunpack.c.l.b16 %v631
          %v674 = vunpack.c.l.b16 %v632
          %v675 = vunpack.c.l.b16 %v633
          %v676 = vunpack.c.l.b16 %v634
          %v677 = vunpack.c.l.b16 %v635
          %v678 = vunpack.c.l.b16 %v636
          %v679 = vunpack.c.l.b16 %v637
          %v680 = vpack.c.b16 %v665, %v664
          %v681 = vpack.c.b16 %v667, %v666
          %v682 = vpack.c.b16 %v669, %v668
          %v683 = vpack.c.b16 %v671, %v670
          %v684 = vpack.c.b16 %v673, %v672
          %v685 = vpack.c.b16 %v675, %v674
          %v686 = vpack.c.b16 %v677, %v676
          %v687 = vpack.c.b16 %v679, %v678
          %696 = vmatpush.bf16.msra.mxu0 %v687
          %697 = vmatpush.bf16.msra.mxu0 %v686
          %698 = vmatpush.bf16.msra.mxu0 %v685
          %699 = vmatpush.bf16.msra.mxu0 %v684
          %700 = vmatpush.bf16.msra.mxu0 %v683
          %701 = vmatpush.bf16.msra.mxu0 %v682
          %702 = vmatpush.bf16.msra.mxu0 %v681
          %703 = vmatpush.bf16.msra.mxu0 %v680
          %704 = vmatmul.bf16.gmra.mxu0 %v646
          %v705 = vpop.f32.mrf.mxu0
          %v706 = vadd.f32 %v640, %v705
          %v707 = vpop.f32.mrf.mxu0
          %v708 = vadd.f32 %v640, %v707
          %709 = vdwg.mxu0
          %v710 = vsub.f32 0.0, %v706
          %v711 = vsub.f32 0.0, %v708
          %v712 = vmul.f32 %v710, 1.442695
          %v713 = vpow.pop %v712
          %v714 = vmul.f32 %v711, 1.442695
          %v715 = vpow.pop %v714
          %v716 = vadd.f32 %v713, 1.0
          %v717 = vadd.f32 %v715, 1.0
          %v718 = vrcp.pop %v716
          %v719 = vmul.f32 %v716, %v718
          %v720 = vsub.f32 1.0, %v719
          %v721 = vmul.f32 %v718, %v720
          %v722 = vadd.f32 %v718, %v721
          %vm723 = vweird.f32 %v716
          %vm724 = vweird.f32 %v718
          %vm725 = vmor %vm723, %vm724
          %v726 = vsel %vm725, %v718, %v722
          %v727 = vand.u32 2147483647, %v716
          %vm728 = vcmp.eq.f32.partialorder %v727, 8.507059e+37
          %v729 = vand.u32 %v716, 2147483648
          %v730 = vor.u32 1.1754944e-38, %v729
          %v731 = vsel %vm728, %v730, %v726
          %v732 = vmul.f32 1.0, %v731
          %v733 = vrcp.pop %v717
          %v734 = vmul.f32 %v717, %v733
          %v735 = vsub.f32 1.0, %v734
          %v736 = vmul.f32 %v733, %v735
          %v737 = vadd.f32 %v733, %v736
          %vm738 = vweird.f32 %v717
          %vm739 = vweird.f32 %v733
          %vm740 = vmor %vm738, %vm739
          %v741 = vsel %vm740, %v733, %v737
          %v742 = vand.u32 2147483647, %v717
          %vm743 = vcmp.eq.f32.partialorder %v742, 8.507059e+37
          %v744 = vand.u32 %v717, 2147483648
          %v745 = vor.u32 1.1754944e-38, %v744
          %v746 = vsel %vm743, %v745, %v741
          %v747 = vmul.f32 1.0, %v746
          %vm748 = vcmask 7168
          %749 = vst.msk [vmem:[#allocation3] sm:$0xff] %vm748, %v732
          %750 = vst.msk [vmem:[#allocation3 + $0x8] sm:$0xff] %vm748, %v747
          %v751 = vsub.f32 1.0, %v732
          %v752 = vsub.f32 1.0, %v747
          %v753 = vld [vmem:[%s513] sm:$0xff]
          %v754 = vld [vmem:[%s513 + $0x8] sm:$0xff]
          %756 = vset.pattern.permute.xlu0 0
          %757 = vperm.xlu0 %756, %v751
          %v758 = vpop.permute.xlu0 %757
          %761 = vset.pattern.permute.xlu0 0
          %762 = vperm.xlu0 %761, %v752
          %v763 = vpop.permute.xlu0 %762
          %v765 = vmul.f32 %v758, %v753
          %v766 = vmul.f32 %v763, %v754
          %vm767 = vcmask 64512
          %768 = vst.msk [vmem:[#allocation4] sm:$0xff] %vm767, %v765
          %769 = vst.msk [vmem:[#allocation4 + $0x8] sm:$0xff] %vm767, %v766
          %770 = vst.msk [vmem:[#allocation5] sm:$0xff] %vm748, -inf
          %771 = vst.msk [vmem:[#allocation5 + $0x8] sm:$0xff] %vm748, -inf
          %772 = vst.msk [vmem:[#allocation6] sm:$0xff] %vm748, 0.0
          %773 = vst.msk [vmem:[#allocation6 + $0x8] sm:$0xff] %vm748, 0.0
        $region72: #{tpu_custom_call.1} parent=55 // pred_fallthru
          _
        // Predicated region
        $region73: #{tpu_custom_call.1} parent=55 // pred_check
          %p774 = pneg %p518
        $region74: #{tpu_custom_call.1} parent=55 // pred_check_branch
          %776 = sbr.rel (%p774) target = $region76
        $region75: #{tpu_custom_call.1} parent=55 // pred_region
          %v777 = vld [vmem:[#allocation2] sm:$0xf]
          %v778 = vld [vmem:[#allocation2 + $0x4] sm:$0xf]
          %v779 = vld [vmem:[%s428] sm:$0xff]
          %v780 = vld [vmem:[%s428 + $0x8] sm:$0xff]
          %v781 = vld [vmem:[%s428 + $0x10] sm:$0xff]
          %v782 = vld [vmem:[%s428 + $0x18] sm:$0xff]
          %v783 = vld [vmem:[%s428 + $0x20] sm:$0xff]
          %v784 = vld [vmem:[%s428 + $0x28] sm:$0xff]
          %v785 = vld [vmem:[%s428 + $0x30] sm:$0xff]
          %v786 = vld [vmem:[%s428 + $0x38] sm:$0xff]
          %v787 = vld [vmem:[%s428 + $0x40] sm:$0xff]
          %v788 = vld [vmem:[%s428 + $0x48] sm:$0xff]
          %v789 = vld [vmem:[%s428 + $0x50] sm:$0xff]
          %v790 = vld [vmem:[%s428 + $0x58] sm:$0xff]
          %v791 = vld [vmem:[%s428 + $0x60] sm:$0xff]
          %v792 = vld [vmem:[%s428 + $0x68] sm:$0xff]
          %v793 = vld [vmem:[%s428 + $0x70] sm:$0xff]
          %v794 = vld [vmem:[%s428 + $0x78] sm:$0xff]
          %v795 = vld [vmem:[%s499] sm:$0x3]
          %v797 = vperm.slane %v795, 0
          %v798 = vperm.slane %v795, 1
          %v803 = vunpack.c.l.b16 %v777
          %v804 = vunpack.c.l.b16 %v778
          %v805 = vpack.c.b16 %v804, %v803
          %v823 = vunpack.c.l.b16 %v779
          %v824 = vunpack.c.h.b16 %v779
          %v825 = vunpack.c.l.b16 %v780
          %v826 = vunpack.c.h.b16 %v780
          %v827 = vunpack.c.l.b16 %v781
          %v828 = vunpack.c.h.b16 %v781
          %v829 = vunpack.c.l.b16 %v782
          %v830 = vunpack.c.h.b16 %v782
          %v831 = vunpack.c.l.b16 %v783
          %v832 = vunpack.c.h.b16 %v783
          %v833 = vunpack.c.l.b16 %v784
          %v834 = vunpack.c.h.b16 %v784
          %v835 = vunpack.c.l.b16 %v785
          %v836 = vunpack.c.h.b16 %v785
          %v837 = vunpack.c.l.b16 %v786
          %v838 = vunpack.c.h.b16 %v786
          %v839 = vunpack.c.l.b16 %v787
          %v840 = vunpack.c.h.b16 %v787
          %v841 = vunpack.c.l.b16 %v788
          %v842 = vunpack.c.h.b16 %v788
          %v843 = vunpack.c.l.b16 %v789
          %v844 = vunpack.c.h.b16 %v789
          %v845 = vunpack.c.l.b16 %v790
          %v846 = vunpack.c.h.b16 %v790
          %v847 = vunpack.c.l.b16 %v791
          %v848 = vunpack.c.h.b16 %v791
          %v849 = vunpack.c.l.b16 %v792
          %v850 = vunpack.c.h.b16 %v792
          %v851 = vunpack.c.l.b16 %v793
          %v852 = vunpack.c.h.b16 %v793
          %v853 = vunpack.c.l.b16 %v794
          %v854 = vunpack.c.h.b16 %v794
          %v855 = vpack.c.b16 %v825, %v823
          %v856 = vpack.c.b16 %v826, %v824
          %v857 = vpack.c.b16 %v829, %v827
          %v858 = vpack.c.b16 %v830, %v828
          %v859 = vpack.c.b16 %v833, %v831
          %v860 = vpack.c.b16 %v834, %v832
          %v861 = vpack.c.b16 %v837, %v835
          %v862 = vpack.c.b16 %v838, %v836
          %v863 = vpack.c.b16 %v841, %v839
          %v864 = vpack.c.b16 %v842, %v840
          %v865 = vpack.c.b16 %v845, %v843
          %v866 = vpack.c.b16 %v846, %v844
          %v867 = vpack.c.b16 %v849, %v847
          %v868 = vpack.c.b16 %v850, %v848
          %v869 = vpack.c.b16 %v853, %v851
          %v870 = vpack.c.b16 %v854, %v852
          %887 = vmatpush.bf16.msra.mxu0 %v869
          %888 = vmatpush.bf16.msra.mxu0 %v867
          %889 = vmatpush.bf16.msra.mxu0 %v865
          %890 = vmatpush.bf16.msra.mxu0 %v863
          %891 = vmatpush.bf16.msra.mxu0 %v861
          %892 = vmatpush.bf16.msra.mxu0 %v859
          %893 = vmatpush.bf16.msra.mxu0 %v857
          %894 = vmatpush.bf16.msra.mxu0 %v855
          %895 = vmatmul.bf16.gmra.mxu0 %v805
          %v896 = vpop.f32.mrf.mxu0
          %v897 = vadd.f32 %v797, %v896
          %v898 = vpop.f32.mrf.mxu0
          %v899 = vadd.f32 %v797, %v898
          %900 = vdwg.mxu0
          %901 = vmatpush.bf16.msra.mxu0 %v870
          %902 = vmatpush.bf16.msra.mxu0 %v868
          %903 = vmatpush.bf16.msra.mxu0 %v866
          %904 = vmatpush.bf16.msra.mxu0 %v864
          %905 = vmatpush.bf16.msra.mxu0 %v862
          %906 = vmatpush.bf16.msra.mxu0 %v860
          %907 = vmatpush.bf16.msra.mxu0 %v858
          %908 = vmatpush.bf16.msra.mxu0 %v856
          %909 = vmatmul.bf16.gmra.mxu0 %v805
          %v910 = vpop.f32.mrf.mxu0
          %v911 = vadd.f32 %v798, %v910
          %v912 = vpop.f32.mrf.mxu0
          %v913 = vadd.f32 %v798, %v912
          %914 = vdwg.mxu0
          %s915 = smul.u32 %s32, 4
          %s916 = smul.addr %s915, 8
          %s917 = scalar_lea.vmem [#allocation7], %s916
          %918 = vst [vmem:[%s917] sm:$0xff] %v897
          %919 = vst [vmem:[%s917 + $0x8] sm:$0xff] %v911
          %920 = vst [vmem:[%s917 + $0x10] sm:$0xff] %v899
          %921 = vst [vmem:[%s917 + $0x18] sm:$0xff] %v913
          %v922 = vld [vmem:[#allocation5] sm:$0xff]
          %v923 = vld [vmem:[#allocation5 + $0x8] sm:$0xff]
          %v924 = vmax.f32 %v897, %v911
          %925 = vmax.xlane.f32.xlu0 %v924
          %v926 = vpop.xlane.xlu0 %925
          %v927 = vmax.f32 %v899, %v913
          %928 = vmax.xlane.f32.xlu0 %v927
          %v929 = vpop.xlane.xlu0 %928
          %v930 = vmax.f32 %v922, %v926
          %v931 = vmax.f32 %v923, %v929
          %v932 = vld [vmem:[#allocation6] sm:$0xff]
          %v933 = vld [vmem:[#allocation6 + $0x8] sm:$0xff]
          %v934 = vsub.f32 %v922, %v930
          %v935 = vsub.f32 %v923, %v931
          %v936 = vmul.f32 %v934, 1.442695
          %v937 = vpow.pop %v936
          %v938 = vmul.f32 %v935, 1.442695
          %v939 = vpow.pop %v938
          %v940 = vmul.f32 %v932, %v937
          %v941 = vmul.f32 %v933, %v939
          %943 = vset.pattern.permute.xlu0 0
          %944 = vperm.xlu0 %943, %v930
          %v945 = vpop.permute.xlu0 %944
          %948 = vset.pattern.permute.xlu0 0
          %949 = vperm.xlu0 %948, %v931
          %v950 = vpop.permute.xlu0 %949
          %v952 = vsub.f32 %v897, %v945
          %v953 = vsub.f32 %v911, %v945
          %v954 = vsub.f32 %v899, %v950
          %v955 = vsub.f32 %v913, %v950
          %v956 = vmul.f32 %v952, 1.442695
          %v957 = vpow.pop %v956
          %v958 = vmul.f32 %v953, 1.442695
          %v959 = vpow.pop %v958
          %v960 = vmul.f32 %v954, 1.442695
          %v961 = vpow.pop %v960
          %v962 = vmul.f32 %v955, 1.442695
          %v963 = vpow.pop %v962
          %v964 = vadd.f32 %v957, %v959
          %965 = vadd.xlane.f32.xlu0 %v964
          %v966 = vpop.xlane.xlu0 %965
          %v967 = vadd.f32 %v961, %v963
          %968 = vadd.xlane.f32.xlu0 %v967
          %v969 = vpop.xlane.xlu0 %968
          %v970 = vadd.f32 %v940, %v966
          %v971 = vadd.f32 %v941, %v969
          %vm972 = vcmask 7168
          %973 = vst.msk [vmem:[#allocation6] sm:$0xff] %vm972, %v970
          %974 = vst.msk [vmem:[#allocation6 + $0x8] sm:$0xff] %vm972, %v971
          %975 = vst.msk [vmem:[#allocation5] sm:$0xff] %vm972, %v930
          %976 = vst.msk [vmem:[#allocation5 + $0x8] sm:$0xff] %vm972, %v931
        $region76: #{tpu_custom_call.1} parent=55 // pred_fallthru
          _
        %p977 = scmp.eq.s32.totalorder %s31, 1
        // Predicated region
        $region77: #{tpu_custom_call.1} parent=55 // pred_check
          %p978 = pneg %p977
        $region78: #{tpu_custom_call.1} parent=55 // pred_check_branch
          %980 = sbr.rel (%p978) target = $region80
        $region79: #{tpu_custom_call.1} parent=55 // pred_region
          %s981 = smul.u32 %s32, 4
          %s982 = smul.addr %s981, 8
          %s983 = scalar_lea.vmem [#allocation7], %s982
          %v984 = vld [vmem:[%s983] sm:$0xff]
          %v985 = vld [vmem:[%s983 + $0x8] sm:$0xff]
          %v986 = vld [vmem:[%s983 + $0x10] sm:$0xff]
          %v987 = vld [vmem:[%s983 + $0x18] sm:$0xff]
          %v988 = vld [vmem:[#allocation5] sm:$0xff]
          %v989 = vld [vmem:[#allocation5 + $0x8] sm:$0xff]
          %v990 = vld [vmem:[#allocation6] sm:$0xff]
          %v991 = vld [vmem:[#allocation6 + $0x8] sm:$0xff]
          %v992 = vrcp.pop %v990
          %v993 = vrcp.pop %v991
          %v994 = vmul.f32 %v990, %v992
          %v995 = vmul.f32 %v991, %v993
          %v996 = vsub.f32 2.0, %v994
          %v997 = vsub.f32 2.0, %v995
          %v998 = vmul.f32 %v992, %v996
          %v999 = vmul.f32 %v993, %v997
          %v1000 = vld [vmem:[#allocation3] sm:$0xff]
          %v1001 = vld [vmem:[#allocation3 + $0x8] sm:$0xff]
          %v1002 = vld [vmem:[%s507] sm:$0xff]
          %v1003 = vld [vmem:[%s507 + $0x8] sm:$0xff]
          %v1004 = vld [vmem:[#allocation4] sm:$0xff]
          %v1005 = vld [vmem:[#allocation4 + $0x8] sm:$0xff]
          %s1006 = smul.u32 %s32, 256
          %1008 = vset.pattern.permute.xlu0 0
          %1009 = vperm.xlu0 %1008, %v988
          %v1010 = vpop.permute.xlu0 %1009
          %1013 = vset.pattern.permute.xlu0 0
          %1014 = vperm.xlu0 %1013, %v989
          %v1015 = vpop.permute.xlu0 %1014
          %v1017 = vsub.f32 %v984, %v1010
          %v1018 = vsub.f32 %v985, %v1010
          %v1019 = vsub.f32 %v986, %v1015
          %v1020 = vsub.f32 %v987, %v1015
          %v1021 = vmul.f32 %v1017, 1.442695
          %v1022 = vpow.pop %v1021
          %v1023 = vmul.f32 %v1018, 1.442695
          %v1024 = vpow.pop %v1023
          %v1025 = vmul.f32 %v1019, 1.442695
          %v1026 = vpow.pop %v1025
          %v1027 = vmul.f32 %v1020, 1.442695
          %v1028 = vpow.pop %v1027
          %1030 = vset.pattern.permute.xlu0 0
          %1031 = vperm.xlu0 %1030, %v998
          %v1032 = vpop.permute.xlu0 %1031
          %1035 = vset.pattern.permute.xlu0 0
          %1036 = vperm.xlu0 %1035, %v999
          %v1037 = vpop.permute.xlu0 %1036
          %v1039 = vmul.f32 %v1022, %v1032
          %v1040 = vmul.f32 %v1024, %v1032
          %v1041 = vmul.f32 %v1026, %v1037
          %v1042 = vmul.f32 %v1028, %v1037
          %1044 = vset.pattern.permute.xlu0 0
          %1045 = vperm.xlu0 %1044, %v1000
          %v1046 = vpop.permute.xlu0 %1045
          %1049 = vset.pattern.permute.xlu0 0
          %1050 = vperm.xlu0 %1049, %v1001
          %v1051 = vpop.permute.xlu0 %1050
          %v1053 = vmul.f32 %v1046, %v1039
          %v1054 = vmul.f32 %v1046, %v1040
          %v1055 = vmul.f32 %v1051, %v1041
          %v1056 = vmul.f32 %v1051, %v1042
          %v1057 = vlaneseq
          %v1058 = vand.u32 %v1057, 127
          %v1059 = vadd.s32 %v1058, 128
          %v1060 = vstv %s1006
          %v1061 = vadd.s32 %v1058, %v1060
          %v1062 = vadd.s32 %v1059, %v1060
          %1063 = vset.pattern.permute.xlu0 0
          %1064 = vperm.xlu0 %1063, %v1002
          %v1065 = vpop.permute.xlu0 %1064
          %1066 = vset.pattern.permute.xlu0 0
          %1067 = vperm.xlu0 %1066, %v1003
          %v1068 = vpop.permute.xlu0 %1067
          %vm1069 = vcmp.eq.s32.totalorder %v1061, %v1065
          %vm1070 = vcmp.eq.s32.totalorder %v1062, %v1065
          %vm1071 = vcmp.eq.s32.totalorder %v1061, %v1068
          %vm1072 = vcmp.eq.s32.totalorder %v1062, %v1068
          %1074 = vset.pattern.permute.xlu0 0
          %1075 = vperm.xlu0 %1074, %v1004
          %v1076 = vpop.permute.xlu0 %1075
          %1079 = vset.pattern.permute.xlu0 0
          %1080 = vperm.xlu0 %1079, %v1005
          %v1081 = vpop.permute.xlu0 %1080
          %v1083 = vsel %vm1069, %v1076, 0.0
          %v1084 = vsel %vm1070, %v1076, 0.0
          %v1085 = vsel %vm1071, %v1081, 0.0
          %v1086 = vsel %vm1072, %v1081, 0.0
          %v1087 = vadd.f32 %v1053, %v1083
          %v1088 = vadd.f32 %v1054, %v1084
          %v1089 = vadd.f32 %v1055, %v1085
          %v1090 = vadd.f32 %v1056, %v1086
          %1091 = vset.pattern.permute.xlu0 1
          %1092 = vperm.xlu0 %1091, %v1002
          %v1093 = vpop.permute.xlu0 %1092
          %1094 = vset.pattern.permute.xlu0 1
          %1095 = vperm.xlu0 %1094, %v1003
          %v1096 = vpop.permute.xlu0 %1095
          %vm1097 = vcmp.eq.s32.totalorder %v1061, %v1093
          %vm1098 = vcmp.eq.s32.totalorder %v1062, %v1093
          %vm1099 = vcmp.eq.s32.totalorder %v1061, %v1096
          %vm1100 = vcmp.eq.s32.totalorder %v1062, %v1096
          %1101 = vset.pattern.permute.xlu0 1
          %1102 = vperm.xlu0 %1101, %v1004
          %v1103 = vpop.permute.xlu0 %1102
          %1105 = vset.pattern.permute.xlu0 1
          %1106 = vperm.xlu0 %1105, %v1005
          %v1107 = vpop.permute.xlu0 %1106
          %v1109 = vsel %vm1097, %v1103, 0.0
          %v1110 = vsel %vm1098, %v1103, 0.0
          %v1111 = vsel %vm1099, %v1107, 0.0
          %v1112 = vsel %vm1100, %v1107, 0.0
          %v1113 = vadd.f32 %v1087, %v1109
          %v1114 = vadd.f32 %v1088, %v1110
          %v1115 = vadd.f32 %v1089, %v1111
          %v1116 = vadd.f32 %v1090, %v1112
          %1117 = vset.pattern.permute.xlu0 2
          %1118 = vperm.xlu0 %1117, %v1002
          %v1119 = vpop.permute.xlu0 %1118
          %1120 = vset.pattern.permute.xlu0 2
          %1121 = vperm.xlu0 %1120, %v1003
          %v1122 = vpop.permute.xlu0 %1121
          %vm1123 = vcmp.eq.s32.totalorder %v1061, %v1119
          %vm1124 = vcmp.eq.s32.totalorder %v1062, %v1119
          %vm1125 = vcmp.eq.s32.totalorder %v1061, %v1122
          %vm1126 = vcmp.eq.s32.totalorder %v1062, %v1122
          %1127 = vset.pattern.permute.xlu0 2
          %1128 = vperm.xlu0 %1127, %v1004
          %v1129 = vpop.permute.xlu0 %1128
          %1131 = vset.pattern.permute.xlu0 2
          %1132 = vperm.xlu0 %1131, %v1005
          %v1133 = vpop.permute.xlu0 %1132
          %v1135 = vsel %vm1123, %v1129, 0.0
          %v1136 = vsel %vm1124, %v1129, 0.0
          %v1137 = vsel %vm1125, %v1133, 0.0
          %v1138 = vsel %vm1126, %v1133, 0.0
          %v1139 = vadd.f32 %v1113, %v1135
          %v1140 = vadd.f32 %v1114, %v1136
          %v1141 = vadd.f32 %v1115, %v1137
          %v1142 = vadd.f32 %v1116, %v1138
          %1143 = vset.pattern.permute.xlu0 3
          %1144 = vperm.xlu0 %1143, %v1002
          %v1145 = vpop.permute.xlu0 %1144
          %1146 = vset.pattern.permute.xlu0 3
          %1147 = vperm.xlu0 %1146, %v1003
          %v1148 = vpop.permute.xlu0 %1147
          %vm1149 = vcmp.eq.s32.totalorder %v1061, %v1145
          %vm1150 = vcmp.eq.s32.totalorder %v1062, %v1145
          %vm1151 = vcmp.eq.s32.totalorder %v1061, %v1148
          %vm1152 = vcmp.eq.s32.totalorder %v1062, %v1148
          %1153 = vset.pattern.permute.xlu0 3
          %1154 = vperm.xlu0 %1153, %v1004
          %v1155 = vpop.permute.xlu0 %1154
          %1157 = vset.pattern.permute.xlu0 3
          %1158 = vperm.xlu0 %1157, %v1005
          %v1159 = vpop.permute.xlu0 %1158
          %v1161 = vsel %vm1149, %v1155, 0.0
          %v1162 = vsel %vm1150, %v1155, 0.0
          %v1163 = vsel %vm1151, %v1159, 0.0
          %v1164 = vsel %vm1152, %v1159, 0.0
          %v1165 = vadd.f32 %v1139, %v1161
          %v1166 = vadd.f32 %v1140, %v1162
          %v1167 = vadd.f32 %v1141, %v1163
          %v1168 = vadd.f32 %v1142, %v1164
          %1169 = vset.pattern.permute.xlu0 4
          %1170 = vperm.xlu0 %1169, %v1002
          %v1171 = vpop.permute.xlu0 %1170
          %1172 = vset.pattern.permute.xlu0 4
          %1173 = vperm.xlu0 %1172, %v1003
          %v1174 = vpop.permute.xlu0 %1173
          %vm1175 = vcmp.eq.s32.totalorder %v1061, %v1171
          %vm1176 = vcmp.eq.s32.totalorder %v1062, %v1171
          %vm1177 = vcmp.eq.s32.totalorder %v1061, %v1174
          %vm1178 = vcmp.eq.s32.totalorder %v1062, %v1174
          %1179 = vset.pattern.permute.xlu0 4
          %1180 = vperm.xlu0 %1179, %v1004
          %v1181 = vpop.permute.xlu0 %1180
          %1183 = vset.pattern.permute.xlu0 4
          %1184 = vperm.xlu0 %1183, %v1005
          %v1185 = vpop.permute.xlu0 %1184
          %v1187 = vsel %vm1175, %v1181, 0.0
          %v1188 = vsel %vm1176, %v1181, 0.0
          %v1189 = vsel %vm1177, %v1185, 0.0
          %v1190 = vsel %vm1178, %v1185, 0.0
          %v1191 = vadd.f32 %v1165, %v1187
          %v1192 = vadd.f32 %v1166, %v1188
          %v1193 = vadd.f32 %v1167, %v1189
          %v1194 = vadd.f32 %v1168, %v1190
          %1195 = vset.pattern.permute.xlu0 5
          %1196 = vperm.xlu0 %1195, %v1002
          %v1197 = vpop.permute.xlu0 %1196
          %1198 = vset.pattern.permute.xlu0 5
          %1199 = vperm.xlu0 %1198, %v1003
          %v1200 = vpop.permute.xlu0 %1199
          %vm1201 = vcmp.eq.s32.totalorder %v1061, %v1197
          %vm1202 = vcmp.eq.s32.totalorder %v1062, %v1197
          %vm1203 = vcmp.eq.s32.totalorder %v1061, %v1200
          %vm1204 = vcmp.eq.s32.totalorder %v1062, %v1200
          %1205 = vset.pattern.permute.xlu0 5
          %1206 = vperm.xlu0 %1205, %v1004
          %v1207 = vpop.permute.xlu0 %1206
          %1209 = vset.pattern.permute.xlu0 5
          %1210 = vperm.xlu0 %1209, %v1005
          %v1211 = vpop.permute.xlu0 %1210
          %v1213 = vsel %vm1201, %v1207, 0.0
          %v1214 = vsel %vm1202, %v1207, 0.0
          %v1215 = vsel %vm1203, %v1211, 0.0
          %v1216 = vsel %vm1204, %v1211, 0.0
          %v1217 = vadd.f32 %v1191, %v1213
          %v1218 = vadd.f32 %v1192, %v1214
          %v1219 = vadd.f32 %v1193, %v1215
          %v1220 = vadd.f32 %v1194, %v1216
          %1221 = vset.pattern.permute.xlu0 6
          %1222 = vperm.xlu0 %1221, %v1002
          %v1223 = vpop.permute.xlu0 %1222
          %1224 = vset.pattern.permute.xlu0 6
          %1225 = vperm.xlu0 %1224, %v1003
          %v1226 = vpop.permute.xlu0 %1225
          %vm1227 = vcmp.eq.s32.totalorder %v1061, %v1223
          %vm1228 = vcmp.eq.s32.totalorder %v1062, %v1223
          %vm1229 = vcmp.eq.s32.totalorder %v1061, %v1226
          %vm1230 = vcmp.eq.s32.totalorder %v1062, %v1226
          %1231 = vset.pattern.permute.xlu0 6
          %1232 = vperm.xlu0 %1231, %v1004
          %v1233 = vpop.permute.xlu0 %1232
          %1235 = vset.pattern.permute.xlu0 6
          %1236 = vperm.xlu0 %1235, %v1005
          %v1237 = vpop.permute.xlu0 %1236
          %v1239 = vsel %vm1227, %v1233, 0.0
          %v1240 = vsel %vm1228, %v1233, 0.0
          %v1241 = vsel %vm1229, %v1237, 0.0
          %v1242 = vsel %vm1230, %v1237, 0.0
          %v1243 = vadd.f32 %v1217, %v1239
          %v1244 = vadd.f32 %v1218, %v1240
          %v1245 = vadd.f32 %v1219, %v1241
          %v1246 = vadd.f32 %v1220, %v1242
          %1247 = vset.pattern.permute.xlu0 7
          %1248 = vperm.xlu0 %1247, %v1002
          %v1249 = vpop.permute.xlu0 %1248
          %1250 = vset.pattern.permute.xlu0 7
          %1251 = vperm.xlu0 %1250, %v1003
          %v1252 = vpop.permute.xlu0 %1251
          %vm1253 = vcmp.eq.s32.totalorder %v1061, %v1249
          %vm1254 = vcmp.eq.s32.totalorder %v1062, %v1249
          %vm1255 = vcmp.eq.s32.totalorder %v1061, %v1252
          %vm1256 = vcmp.eq.s32.totalorder %v1062, %v1252
          %1257 = vset.pattern.permute.xlu0 7
          %1258 = vperm.xlu0 %1257, %v1004
          %v1259 = vpop.permute.xlu0 %1258
          %1261 = vset.pattern.permute.xlu0 7
          %1262 = vperm.xlu0 %1261, %v1005
          %v1263 = vpop.permute.xlu0 %1262
          %v1265 = vsel %vm1253, %v1259, 0.0
          %v1266 = vsel %vm1254, %v1259, 0.0
          %v1267 = vsel %vm1255, %v1263, 0.0
          %v1268 = vsel %vm1256, %v1263, 0.0
          %v1269 = vadd.f32 %v1243, %v1265
          %v1270 = vadd.f32 %v1244, %v1266
          %v1271 = vadd.f32 %v1245, %v1267
          %v1272 = vadd.f32 %v1246, %v1268
          %1273 = vst [vmem:[%s484] sm:$0xff] %v1269
          %1274 = vst [vmem:[%s484 + $0x8] sm:$0xff] %v1270
          %1275 = vst [vmem:[%s484 + $0x10] sm:$0xff] %v1271
          %1276 = vst [vmem:[%s484 + $0x18] sm:$0xff] %v1272
        $region80: #{tpu_custom_call.1} parent=55 // pred_fallthru
          _
        %s1277 = sand.u32 %s278, 1
        %s1278 = scalar_lea.sflag [#allocation10], %s1277
        %s1279 = sand.u32 %s278, 1
        %s1280 = smul.addr %s1279, 32
        %s1281 = scalar_lea.vmem [#allocation14], %s1280
        // Predicated region
        $region81: #{tpu_custom_call.1} parent=55 // pred_check
          %p1282 = pneg %p288
        $region82: #{tpu_custom_call.1} parent=55 // pred_check_branch
          %1284 = sbr.rel (%p1282) target = $region84
        $region83: #{tpu_custom_call.1} parent=55 // pred_region
          %s1285 = smul.u32 %s32, %s31
          %s1286 = smul.u32 2, %s30
          %s1287 = smul.u32 2, %s1285
          %1289 = vsyncadd %s1278, 0
          %s1290 = smul.addr %s1286, 2
          %s1291 = sadd.s32 %s1287, %s1290
          %s1292 = smul.addr %s1291, 8
          %s1293 = scalar_lea.hbm %s9, %s1292
          %s1294 = sshll.u32 %s1281, 4
          %s1295 = int_to_ptr.vmem [resolvable:$true] %s1294
          %s1296 = sshll.u32 %s1293, 4
          %s1297 = int_to_ptr.hbm [resolvable:$true] %s1296
          %1302 = dma.vmem_to_hbm [thread:$0]  %s1295, 512, %s1297, %s1278, 256, 256, 16
        $region84: #{tpu_custom_call.1} parent=55 // pred_fallthru
          _
      $region56: #{tpu_custom_call.1} parent=5 // pred_fallthru
        _
      %p1303 = scmp.le.s32.totalorder 2, %s20
      // Predicated region
      $region85: #{tpu_custom_call.1} parent=5 // pred_check
        %p1304 = pneg %p1303
      $region86: #{tpu_custom_call.1} parent=5 // pred_check_branch
        %1306 = sbr.rel (%p1304) target = $region88
      $region87: #{tpu_custom_call.1} parent=5 // pred_region
        %s1307 = ssub.s32 %s20, 2
        // Predicated region
        $region89: #{tpu_custom_call.1} parent=87 // pred_check
          %p1308 = pneg %p294
        $region90: #{tpu_custom_call.1} parent=87 // pred_check_branch
          %1310 = sbr.rel (%p1308) target = $region92
        $region91: #{tpu_custom_call.1} parent=87 // pred_region
          %s1311 = sand.u32 %s279, 1
          %s1312 = scalar_lea.sflag [#allocation10], %s1311
          %s1313 = sand.u32 %s279, 1
          %s1314 = smul.addr %s1313, 32
          %s1315 = scalar_lea.vmem [#allocation14], %s1314
          %1317 = dma.done %s1312, 512
        $region92: #{tpu_custom_call.1} parent=87 // pred_fallthru
          _
      $region88: #{tpu_custom_call.1} parent=5 // pred_fallthru
        _
    $region6: #{tpu_custom_call.1} parent=1 // loop_footer
      %s24 = sadd.s32 1, %s20
    $region7: #{tpu_custom_call.1} parent=1 // loop_footer_branch
      %19 = sbr.rel target = $region3
    $region8: #{tpu_custom_call.1} parent=1 // loop_exit
      _
    %1318 = vsyncpa [#allocation9], 1
    %s1319 = scalar_lea.sflag [#allocation9], 1
    %1320 = vsyncpa %s1319, 1
    %1321 = vsyncpa [#allocation12], 1
    %1322 = vsyncpa [#allocation10], 1
    %s1323 = scalar_lea.sflag [#allocation10], 1
    %1324 = vsyncpa %s1323, 1

</llo_original>
